<compile_context>
chip_gen: v7x
topology: tpu7x:2x2x1
jax: 0.10.0
libtpu: 0.0.40
codegen_flags: <defaults>
</compile_context>

<pallas_src>
import numpy as np
import jax
import jax.numpy as jnp
from jax import lax
from jax.experimental import pallas as pl
from jax.experimental.pallas import tpu as pltpu


# ----------------------------------------------------------------------------------
# Parameter init (deterministic, mirrors torch create_unit_mapping)
# ----------------------------------------------------------------------------------
def create_unit_mapping(in_channels, out_channels, kernel_size):
    res = np.zeros((out_channels, in_channels, kernel_size, kernel_size), np.float32)
    c = kernel_size // 2
    for i in range(out_channels):
        for j in range(in_channels):
            if j == i:
                res[i, j, c, c] = 1.0
    return jnp.asarray(res)


def _pick_row_tile(OH, OW):
    """Output rows per grid step.  Prefer a flattened width TOH*OW that is a multiple of
    128 lanes (lane-dense stores / matmul N); otherwise take the whole output so the
    block equals the full array dims (always BlockSpec-legal)."""
    for toh in range(1, OH + 1):
        if OH % toh == 0 and (toh * OW) % 128 == 0:
            return toh
    return OH


# ----------------------------------------------------------------------------------
# Pallas kernel: one (batch, output-row-tile) per grid step.
#   x_ref  : (1, C, H*W)       image, spatially flattened (lanes = H*W)
#   prm_ref: (1, 3, N)         rows: center-y, center-x, dilation per output pixel
#   w_ref  : (OC, K*K*C)       weight with all taps stacked on the contraction axis
#   o_ref  : (1, OC, N)        flattened output tile (N = TOH*OW lanes)
#   s_ref  : (K*K*C, N) VMEM   per-tap sampled features, stacked over taps
# ----------------------------------------------------------------------------------
def _make_adaptive_conv_kernel(K, H, W):
    ctr = K // 2
    HW = H * W

    def kernel(x_ref, prm_ref, w_ref, o_ref, s_ref):
        C = x_ref.shape[1]
        N = o_ref.shape[2]

        x2 = x_ref[0]                          # (C, HW)
        prm = prm_ref[0]                       # (3, N)
        cy = prm[0:1, :]                       # (1, N) center rows
        cx = prm[1:2, :]                       # (1, N) center cols
        d = prm[2:3, :]                        # (1, N) per-pixel dilation

        # (row, col) of every flattened image position on the (HW, N) product grid.
        # Float floor-div avoids vector integer division; exact for H*W < 2^22.
        hw_f = lax.broadcasted_iota(jnp.int32, (HW, N), 0).astype(jnp.float32)
        h_of = jnp.floor((hw_f + 0.5) * (1.0 / W))        # image row p
        w_of = hw_f - h_of * float(W)                     # image col q

        # Column hat weights depend only on kw -> hoist out of the kh loop.
        ax = []
        for kw in range(K):
            xs = cx + float(kw - ctr) * d                              # (1, N)
            ax.append(jnp.maximum(0.0, 1.0 - jnp.abs(xs - w_of)))      # (HW, N)

        for kh in range(K):
            y = cy + float(kh - ctr) * d                               # (1, N)
            ay = jnp.maximum(0.0, 1.0 - jnp.abs(y - h_of))             # (HW, N), kh-only
            for kw in range(K):
                t = kh * K + kw
                # Separable bilinear weight on the (HW, N) grid — zero outside the image
                # reproduces zero-padding semantics.  No XLU reduction anywhere.
                wyx = ay * ax[kw]                                      # (HW, N)
                # Spatial sampling as one MXU contraction with K = H*W.
                s_tap = jnp.dot(x2, wyx, preferred_element_type=jnp.float32)  # (C, N)
                s_ref[t * C:(t + 1) * C, :] = s_tap

        # Single fused channel-mix matmul over all taps: (OC, K*K*C) @ (K*K*C, N).
        o_ref[0] = jnp.dot(w_ref[...], s_ref[...],
                           preferred_element_type=jnp.float32).astype(o_ref.dtype)

    return kernel


# ----------------------------------------------------------------------------------
# Wrapper (plain-JAX glue: stride remap, layout prep — all reshapes live out here)
# ----------------------------------------------------------------------------------
def adaptive_conv_pallas(x, stride_h, stride_w, weight, dilation=None,
                         d_factor=1.0, groups=1, adaptive_groups=1):
    assert groups == 1 and adaptive_groups == 1  # TODO(synk): grouped / adaptive-group paths
    B, C, H, W = x.shape
    OC, IC, K, _ = weight.shape
    OH = stride_h.shape[1]
    OW = stride_w.shape[1]
    HW = H * W
    NOUT = OH * OW

    if dilation is None:
        dilation = jnp.ones((B, 1, OH, OW), jnp.float32) * d_factor

    # forward(): stride remap from [-1, 1] to absolute pixel coordinates.
    sh = (stride_h[:, :, 0] + 1.0) * (H - 1) / 2.0        # (B, OH)
    sw = (stride_w[:, :, 0] + 1.0) * (W - 1) / 2.0        # (B, OW)

    # Per-output-pixel parameters, merged into one lane-dense input (3 sublane rows).
    cy = jnp.broadcast_to(sh[:, :, None], (B, OH, OW)).reshape(B, NOUT)
    cx = jnp.broadcast_to(sw[:, None, :], (B, OH, OW)).reshape(B, NOUT)
    dm = dilation[:, 0].reshape(B, NOUT)
    params = jnp.stack([cy, cx, dm], axis=1).astype(jnp.float32)       # (B, 3, NOUT)

    # TODO(synk): feeding x / wyx in bf16 would double MXU throughput on v6e/v7x at the
    # cost of ~1e-2 tolerance; kept f32 here to match the f32 reference tightly.
    x_flat = x.reshape(B, C, HW).astype(jnp.float32)                   # (B, C, H*W)
    # Weight laid out lane-dense 2-D: w2[oc, (kh*K + kw)*C + c] = weight[oc, c, kh, kw].
    w2 = jnp.transpose(weight, (0, 2, 3, 1)).reshape(OC, K * K * IC).astype(jnp.float32)

    TOH = _pick_row_tile(OH, OW)
    NBLK = TOH * OW
    grid = (B, OH // TOH)

    out = pl.pallas_call(
        _make_adaptive_conv_kernel(K, H, W),
        out_shape=jax.ShapeDtypeStruct((B, OC, NOUT), jnp.float32),
        grid=grid,
        in_specs=[
            pl.BlockSpec((1, C, HW), lambda b, r: (b, 0, 0)),
            pl.BlockSpec((1, 3, NBLK), lambda b, r: (b, 0, r)),
            pl.BlockSpec((OC, K * K * IC), lambda b, r: (0, 0)),
        ],
        out_specs=pl.BlockSpec((1, OC, NBLK), lambda b, r: (b, 0, r)),
        scratch_shapes=[pltpu.VMEM((K * K * IC, NBLK), jnp.float32)],
        compiler_params=pltpu.CompilerParams(
            dimension_semantics=("parallel", "parallel")),
    )(x_flat, params, w2)

    return out.reshape(B, OC, OH, OW)    # NCHW, free metadata reshape


class AdaptiveConvPallas:
    """JAX/Pallas re-implementation of AdaptiveConv (bias=False, pool=False)."""

    def __init__(self, in_channels, out_channels, kernel_size=3, padding=0,
                 groups=1, adaptive_groups=1, dilation_factor=1, fix=False, pool=False):
        assert not pool      # TODO(synk): max_pool1d stride-subsampling branch not implemented
        assert padding == 0  # TODO(synk): explicit padding of the custom CUDA op is unspecified
        self.in_channels = in_channels
        self.out_channels = out_channels
        self.kernel_size = kernel_size
        self.groups = groups
        self.adaptive_groups = adaptive_groups
        self.d_factor = float(dilation_factor)
        # Both __init__ branches use the deterministic unit-mapping weight.
        self.weight = create_unit_mapping(in_channels, out_channels, kernel_size)

    def __call__(self, x, stride_h, stride_w, dilation=None):
        return adaptive_conv_pallas(x, stride_h, stride_w, self.weight,
                                    dilation=dilation, d_factor=self.d_factor,
                                    groups=self.groups,
                                    adaptive_groups=self.adaptive_groups)


# ----------------------------------------------------------------------------------
# Pure-JAX reference (same reconstructed semantics) for correctness check
# ----------------------------------------------------------------------------------
def adaptive_conv_reference(x, stride_h, stride_w, weight, d_factor=1.0):
    B, C, H, W = x.shape
    OC, IC, K, _ = weight.shape
    OH = stride_h.shape[1]
    OW = stride_w.shape[1]
    ctr = K // 2
    sh = (stride_h[:, :, 0] + 1.0) * (H - 1) / 2.0
    sw = (stride_w[:, :, 0] + 1.0) * (W - 1) / 2.0
    cy = jnp.broadcast_to(sh[:, :, None], (B, OH, OW))
    cx = jnp.broadcast_to(sw[:, None, :], (B, OH, OW))
    d = jnp.ones((B, OH, OW), jnp.float32) * d_factor
    p = jnp.arange(H, dtype=jnp.float32)
    q = jnp.arange(W, dtype=jnp.float32)
    out = jnp.zeros((B, OC, OH, OW), jnp.float32)
    for kh in range(K):
        for kw in range(K):
            y = cy + (kh - ctr) * d
            xs = cx + (kw - ctr) * d
            wy = jnp.maximum(0.0, 1.0 - jnp.abs(y[..., None] - p))   # (B,OH,OW,H)
            wx = jnp.maximum(0.0, 1.0 - jnp.abs(xs[..., None] - q))  # (B,OH,OW,W)
            s = jnp.einsum('bijp,bijq,bcpq->bcij', wy, wx, x)
            out = out + jnp.einsum('oc,bcij->boij', weight[:, :, kh, kw], s)
    return out


if __name__ == "__main__":
    key = jax.random.PRNGKey(0)
    k1, k2, k3 = jax.random.split(key, 3)

    B, C, H, W = 2, 4, 16, 16
    OC, K = 4, 3
    OH, OW = 8, 8

    x = jax.random.normal(k1, (B, C, H, W), dtype=jnp.float32)
    # Normalized adaptive strides in [-1, 1], shape (B, n_out, 1) like the torch module.
    stride_h = jax.random.uniform(k2, (B, OH, 1), minval=-1.0, maxval=1.0, dtype=jnp.float32)
    stride_w = jax.random.uniform(k3, (B, OW, 1), minval=-1.0, maxval=1.0, dtype=jnp.float32)

    module = AdaptiveConvPallas(C, OC, kernel_size=K, padding=0,
                                groups=1, adaptive_groups=1, dilation_factor=1)

    out = module(x, stride_h, stride_w)            # dilation=None path (ones * d_factor)
    out = jax.block_until_ready(out)

    ref = adaptive_conv_reference(x, stride_h, stride_w, module.weight, d_factor=1.0)
    np.testing.assert_allclose(np.asarray(out), np.asarray(ref), rtol=1e-4, atol=1e-4)

    print("KERNEL_OK")
</pallas_src>

<mosaic_0001>
module attributes {stable_mosaic.version = 11 : i64} {
  func.func @kernel(%arg0: i32, %arg1: i32, %arg2: memref<1x4x256xf32, #tpu.memory_space<vmem>>, %arg3: memref<1x3x64xf32, #tpu.memory_space<vmem>>, %arg4: memref<4x36xf32, #tpu.memory_space<vmem>>, %arg5: memref<1x4x64xf32, #tpu.memory_space<vmem>>, %arg6: memref<36x64xf32, #tpu.memory_space<vmem>>) attributes {dimension_semantics = [#tpu.dimension_semantics<parallel>, #tpu.dimension_semantics<parallel>], iteration_bounds = array<i64: 2, 1>, scalar_prefetch = 0 : i64, scratch_operands = 1 : i64, tpu.core_type = #tpu.core_type<tc>, window_params = [{transform_indices = @transform_0, window_bounds = array<i64: 1, 4, 256>}, {transform_indices = @transform_1, window_bounds = array<i64: 1, 3, 64>}, {pipeline_mode = #tpu.pipeline_mode<synchronous>, transform_indices = @transform_2, window_bounds = array<i64: 4, 36>}, {transform_indices = @transform_3, window_bounds = array<i64: 1, 4, 64>}]} {
    %c0 = arith.constant 0 : index
    %c0_0 = arith.constant 0 : index
    %c0_1 = arith.constant 0 : index
    %0 = vector.load %arg2[%c0, %c0_0, %c0_1] : memref<1x4x256xf32, #tpu.memory_space<vmem>>, vector<1x4x256xf32>
    %1 = vector.shape_cast %0 : vector<1x4x256xf32> to vector<4x256xf32>
    %c0_2 = arith.constant 0 : index
    %c0_3 = arith.constant 0 : index
    %c0_4 = arith.constant 0 : index
    %2 = vector.load %arg3[%c0_2, %c0_3, %c0_4] : memref<1x3x64xf32, #tpu.memory_space<vmem>>, vector<1x3x64xf32>
    %3 = vector.shape_cast %2 : vector<1x3x64xf32> to vector<3x64xf32>
    %4 = vector.extract_strided_slice %3 {offsets = [0, 0], sizes = [1, 64], strides = [1, 1]} : vector<3x64xf32> to vector<1x64xf32>
    %5 = vector.extract_strided_slice %3 {offsets = [1, 0], sizes = [1, 64], strides = [1, 1]} : vector<3x64xf32> to vector<1x64xf32>
    %6 = vector.extract_strided_slice %3 {offsets = [2, 0], sizes = [1, 64], strides = [1, 1]} : vector<3x64xf32> to vector<1x64xf32>
    %7 = tpu.iota {dimensions = array<i32: 0>} : vector<256x64xi32>
    %8 = arith.sitofp %7 : vector<256x64xi32> to vector<256x64xf32>
    %cst = arith.constant 5.000000e-01 : f32
    %9 = vector.broadcast %cst : f32 to vector<256x64xf32>
    %10 = arith.addf %8, %9 : vector<256x64xf32>
    %cst_5 = arith.constant 6.250000e-02 : f32
    %11 = vector.broadcast %cst_5 : f32 to vector<256x64xf32>
    %12 = arith.mulf %10, %11 : vector<256x64xf32>
    %13 = math.floor %12 : vector<256x64xf32>
    %cst_6 = arith.constant 1.600000e+01 : f32
    %14 = vector.broadcast %cst_6 : f32 to vector<256x64xf32>
    %15 = arith.mulf %13, %14 : vector<256x64xf32>
    %16 = arith.subf %8, %15 : vector<256x64xf32>
    %cst_7 = arith.constant -1.000000e+00 : f32
    %17 = vector.broadcast %cst_7 : f32 to vector<1x64xf32>
    %18 = arith.mulf %17, %6 : vector<1x64xf32>
    %19 = arith.addf %5, %18 : vector<1x64xf32>
    %20 = vector.broadcast %19 : vector<1x64xf32> to vector<256x64xf32>
    %21 = arith.subf %20, %16 : vector<256x64xf32>
    %22 = math.absf %21 : vector<256x64xf32>
    %cst_8 = arith.constant 1.000000e+00 : f32
    %23 = vector.broadcast %cst_8 : f32 to vector<256x64xf32>
    %24 = arith.subf %23, %22 : vector<256x64xf32>
    %cst_9 = arith.constant 0.000000e+00 : f32
    %25 = vector.broadcast %cst_9 : f32 to vector<256x64xf32>
    %26 = arith.maximumf %25, %24 : vector<256x64xf32>
    %cst_10 = arith.constant 0.000000e+00 : f32
    %27 = vector.broadcast %cst_10 : f32 to vector<1x64xf32>
    %28 = arith.mulf %27, %6 : vector<1x64xf32>
    %29 = arith.addf %5, %28 : vector<1x64xf32>
    %30 = vector.broadcast %29 : vector<1x64xf32> to vector<256x64xf32>
    %31 = arith.subf %30, %16 : vector<256x64xf32>
    %32 = math.absf %31 : vector<256x64xf32>
    %cst_11 = arith.constant 1.000000e+00 : f32
    %33 = vector.broadcast %cst_11 : f32 to vector<256x64xf32>
    %34 = arith.subf %33, %32 : vector<256x64xf32>
    %cst_12 = arith.constant 0.000000e+00 : f32
    %35 = vector.broadcast %cst_12 : f32 to vector<256x64xf32>
    %36 = arith.maximumf %35, %34 : vector<256x64xf32>
    %cst_13 = arith.constant 1.000000e+00 : f32
    %37 = vector.broadcast %cst_13 : f32 to vector<1x64xf32>
    %38 = arith.mulf %37, %6 : vector<1x64xf32>
    %39 = arith.addf %5, %38 : vector<1x64xf32>
    %40 = vector.broadcast %39 : vector<1x64xf32> to vector<256x64xf32>
    %41 = arith.subf %40, %16 : vector<256x64xf32>
    %42 = math.absf %41 : vector<256x64xf32>
    %cst_14 = arith.constant 1.000000e+00 : f32
    %43 = vector.broadcast %cst_14 : f32 to vector<256x64xf32>
    %44 = arith.subf %43, %42 : vector<256x64xf32>
    %cst_15 = arith.constant 0.000000e+00 : f32
    %45 = vector.broadcast %cst_15 : f32 to vector<256x64xf32>
    %46 = arith.maximumf %45, %44 : vector<256x64xf32>
    %cst_16 = arith.constant -1.000000e+00 : f32
    %47 = vector.broadcast %cst_16 : f32 to vector<1x64xf32>
    %48 = arith.mulf %47, %6 : vector<1x64xf32>
    %49 = arith.addf %4, %48 : vector<1x64xf32>
    %50 = vector.broadcast %49 : vector<1x64xf32> to vector<256x64xf32>
    %51 = arith.subf %50, %13 : vector<256x64xf32>
    %52 = math.absf %51 : vector<256x64xf32>
    %cst_17 = arith.constant 1.000000e+00 : f32
    %53 = vector.broadcast %cst_17 : f32 to vector<256x64xf32>
    %54 = arith.subf %53, %52 : vector<256x64xf32>
    %cst_18 = arith.constant 0.000000e+00 : f32
    %55 = vector.broadcast %cst_18 : f32 to vector<256x64xf32>
    %56 = arith.maximumf %55, %54 : vector<256x64xf32>
    %57 = arith.mulf %56, %26 : vector<256x64xf32>
    %cst_19 = arith.constant dense<0.000000e+00> : vector<4x64xf32>
    %58 = tpu.matmul %1, %57, %cst_19 {dimension_numbers = #tpu.dot_dimension_numbers<[1], [0], [0], [1], [0, 0, 1, 1], [], []>} : vector<4x256xf32>, vector<256x64xf32>, vector<4x64xf32> -> vector<4x64xf32>
    %c0_20 = arith.constant 0 : index
    %c0_21 = arith.constant 0 : index
    %59 = vector.load %arg6[%c0_20, %c0_21] : memref<36x64xf32, #tpu.memory_space<vmem>>, vector<4x64xf32>
    tpu.vector_store %arg6[%c0_20, %c0_21], %58 {strides = array<i32>} : memref<36x64xf32, #tpu.memory_space<vmem>>, vector<4x64xf32>,
    %60 = arith.mulf %56, %36 : vector<256x64xf32>
    %cst_22 = arith.constant dense<0.000000e+00> : vector<4x64xf32>
    %61 = tpu.matmul %1, %60, %cst_22 {dimension_numbers = #tpu.dot_dimension_numbers<[1], [0], [0], [1], [0, 0, 1, 1], [], []>} : vector<4x256xf32>, vector<256x64xf32>, vector<4x64xf32> -> vector<4x64xf32>
    %c4 = arith.constant 4 : index
    %c0_23 = arith.constant 0 : index
    %62 = vector.load %arg6[%c4, %c0_23] : memref<36x64xf32, #tpu.memory_space<vmem>>, vector<4x64xf32>
    tpu.vector_store %arg6[%c4, %c0_23], %61 {strides = array<i32>} : memref<36x64xf32, #tpu.memory_space<vmem>>, vector<4x64xf32>,
    %63 = arith.mulf %56, %46 : vector<256x64xf32>
    %cst_24 = arith.constant dense<0.000000e+00> : vector<4x64xf32>
    %64 = tpu.matmul %1, %63, %cst_24 {dimension_numbers = #tpu.dot_dimension_numbers<[1], [0], [0], [1], [0, 0, 1, 1], [], []>} : vector<4x256xf32>, vector<256x64xf32>, vector<4x64xf32> -> vector<4x64xf32>
    %c8 = arith.constant 8 : index
    %c0_25 = arith.constant 0 : index
    %65 = vector.load %arg6[%c8, %c0_25] : memref<36x64xf32, #tpu.memory_space<vmem>>, vector<4x64xf32>
    tpu.vector_store %arg6[%c8, %c0_25], %64 {strides = array<i32>} : memref<36x64xf32, #tpu.memory_space<vmem>>, vector<4x64xf32>,
    %cst_26 = arith.constant 0.000000e+00 : f32
    %66 = vector.broadcast %cst_26 : f32 to vector<1x64xf32>
    %67 = arith.mulf %66, %6 : vector<1x64xf32>
    %68 = arith.addf %4, %67 : vector<1x64xf32>
    %69 = vector.broadcast %68 : vector<1x64xf32> to vector<256x64xf32>
    %70 = arith.subf %69, %13 : vector<256x64xf32>
    %71 = math.absf %70 : vector<256x64xf32>
    %cst_27 = arith.constant 1.000000e+00 : f32
    %72 = vector.broadcast %cst_27 : f32 to vector<256x64xf32>
    %73 = arith.subf %72, %71 : vector<256x64xf32>
    %cst_28 = arith.constant 0.000000e+00 : f32
    %74 = vector.broadcast %cst_28 : f32 to vector<256x64xf32>
    %75 = arith.maximumf %74, %73 : vector<256x64xf32>
    %76 = arith.mulf %75, %26 : vector<256x64xf32>
    %cst_29 = arith.constant dense<0.000000e+00> : vector<4x64xf32>
    %77 = tpu.matmul %1, %76, %cst_29 {dimension_numbers = #tpu.dot_dimension_numbers<[1], [0], [0], [1], [0, 0, 1, 1], [], []>} : vector<4x256xf32>, vector<256x64xf32>, vector<4x64xf32> -> vector<4x64xf32>
    %c12 = arith.constant 12 : index
    %c0_30 = arith.constant 0 : index
    %78 = vector.load %arg6[%c12, %c0_30] : memref<36x64xf32, #tpu.memory_space<vmem>>, vector<4x64xf32>
    tpu.vector_store %arg6[%c12, %c0_30], %77 {strides = array<i32>} : memref<36x64xf32, #tpu.memory_space<vmem>>, vector<4x64xf32>,
    %79 = arith.mulf %75, %36 : vector<256x64xf32>
    %cst_31 = arith.constant dense<0.000000e+00> : vector<4x64xf32>
    %80 = tpu.matmul %1, %79, %cst_31 {dimension_numbers = #tpu.dot_dimension_numbers<[1], [0], [0], [1], [0, 0, 1, 1], [], []>} : vector<4x256xf32>, vector<256x64xf32>, vector<4x64xf32> -> vector<4x64xf32>
    %c16 = arith.constant 16 : index
    %c0_32 = arith.constant 0 : index
    %81 = vector.load %arg6[%c16, %c0_32] : memref<36x64xf32, #tpu.memory_space<vmem>>, vector<4x64xf32>
    tpu.vector_store %arg6[%c16, %c0_32], %80 {strides = array<i32>} : memref<36x64xf32, #tpu.memory_space<vmem>>, vector<4x64xf32>,
    %82 = arith.mulf %75, %46 : vector<256x64xf32>
    %cst_33 = arith.constant dense<0.000000e+00> : vector<4x64xf32>
    %83 = tpu.matmul %1, %82, %cst_33 {dimension_numbers = #tpu.dot_dimension_numbers<[1], [0], [0], [1], [0, 0, 1, 1], [], []>} : vector<4x256xf32>, vector<256x64xf32>, vector<4x64xf32> -> vector<4x64xf32>
    %c20 = arith.constant 20 : index
    %c0_34 = arith.constant 0 : index
    %84 = vector.load %arg6[%c20, %c0_34] : memref<36x64xf32, #tpu.memory_space<vmem>>, vector<4x64xf32>
    tpu.vector_store %arg6[%c20, %c0_34], %83 {strides = array<i32>} : memref<36x64xf32, #tpu.memory_space<vmem>>, vector<4x64xf32>,
    %cst_35 = arith.constant 1.000000e+00 : f32
    %85 = vector.broadcast %cst_35 : f32 to vector<1x64xf32>
    %86 = arith.mulf %85, %6 : vector<1x64xf32>
    %87 = arith.addf %4, %86 : vector<1x64xf32>
    %88 = vector.broadcast %87 : vector<1x64xf32> to vector<256x64xf32>
    %89 = arith.subf %88, %13 : vector<256x64xf32>
    %90 = math.absf %89 : vector<256x64xf32>
    %cst_36 = arith.constant 1.000000e+00 : f32
    %91 = vector.broadcast %cst_36 : f32 to vector<256x64xf32>
    %92 = arith.subf %91, %90 : vector<256x64xf32>
    %cst_37 = arith.constant 0.000000e+00 : f32
    %93 = vector.broadcast %cst_37 : f32 to vector<256x64xf32>
    %94 = arith.maximumf %93, %92 : vector<256x64xf32>
    %95 = arith.mulf %94, %26 : vector<256x64xf32>
    %cst_38 = arith.constant dense<0.000000e+00> : vector<4x64xf32>
    %96 = tpu.matmul %1, %95, %cst_38 {dimension_numbers = #tpu.dot_dimension_numbers<[1], [0], [0], [1], [0, 0, 1, 1], [], []>} : vector<4x256xf32>, vector<256x64xf32>, vector<4x64xf32> -> vector<4x64xf32>
    %c24 = arith.constant 24 : index
    %c0_39 = arith.constant 0 : index
    %97 = vector.load %arg6[%c24, %c0_39] : memref<36x64xf32, #tpu.memory_space<vmem>>, vector<4x64xf32>
    tpu.vector_store %arg6[%c24, %c0_39], %96 {strides = array<i32>} : memref<36x64xf32, #tpu.memory_space<vmem>>, vector<4x64xf32>,
    %98 = arith.mulf %94, %36 : vector<256x64xf32>
    %cst_40 = arith.constant dense<0.000000e+00> : vector<4x64xf32>
    %99 = tpu.matmul %1, %98, %cst_40 {dimension_numbers = #tpu.dot_dimension_numbers<[1], [0], [0], [1], [0, 0, 1, 1], [], []>} : vector<4x256xf32>, vector<256x64xf32>, vector<4x64xf32> -> vector<4x64xf32>
    %c28 = arith.constant 28 : index
    %c0_41 = arith.constant 0 : index
    %100 = vector.load %arg6[%c28, %c0_41] : memref<36x64xf32, #tpu.memory_space<vmem>>, vector<4x64xf32>
    tpu.vector_store %arg6[%c28, %c0_41], %99 {strides = array<i32>} : memref<36x64xf32, #tpu.memory_space<vmem>>, vector<4x64xf32>,
    %101 = arith.mulf %94, %46 : vector<256x64xf32>
    %cst_42 = arith.constant dense<0.000000e+00> : vector<4x64xf32>
    %102 = tpu.matmul %1, %101, %cst_42 {dimension_numbers = #tpu.dot_dimension_numbers<[1], [0], [0], [1], [0, 0, 1, 1], [], []>} : vector<4x256xf32>, vector<256x64xf32>, vector<4x64xf32> -> vector<4x64xf32>
    %c32 = arith.constant 32 : index
    %c0_43 = arith.constant 0 : index
    %103 = vector.load %arg6[%c32, %c0_43] : memref<36x64xf32, #tpu.memory_space<vmem>>, vector<4x64xf32>
    tpu.vector_store %arg6[%c32, %c0_43], %102 {strides = array<i32>} : memref<36x64xf32, #tpu.memory_space<vmem>>, vector<4x64xf32>,
    %c0_44 = arith.constant 0 : index
    %c0_45 = arith.constant 0 : index
    %104 = vector.load %arg4[%c0_44, %c0_45] : memref<4x36xf32, #tpu.memory_space<vmem>>, vector<4x36xf32>
    %c0_46 = arith.constant 0 : index
    %c0_47 = arith.constant 0 : index
    %105 = vector.load %arg6[%c0_46, %c0_47] : memref<36x64xf32, #tpu.memory_space<vmem>>, vector<36x64xf32>
    %cst_48 = arith.constant dense<0.000000e+00> : vector<4x64xf32>
    %106 = tpu.matmul %104, %105, %cst_48 {dimension_numbers = #tpu.dot_dimension_numbers<[1], [0], [0], [1], [0, 0, 1, 1], [], []>} : vector<4x36xf32>, vector<36x64xf32>, vector<4x64xf32> -> vector<4x64xf32>
    %c0_49 = arith.constant 0 : index
    %c0_50 = arith.constant 0 : index
    %c0_51 = arith.constant 0 : index
    %107 = vector.load %arg5[%c0_49, %c0_50, %c0_51] : memref<1x4x64xf32, #tpu.memory_space<vmem>>, vector<1x4x64xf32>
    %108 = vector.shape_cast %107 : vector<1x4x64xf32> to vector<4x64xf32>
    %109 = vector.shape_cast %106 : vector<4x64xf32> to vector<1x4x64xf32>
    tpu.vector_store %arg5[%c0_49, %c0_50, %c0_51], %109 {strides = array<i32>} : memref<1x4x64xf32, #tpu.memory_space<vmem>>, vector<1x4x64xf32>,
    return
  }
  func.func @transform_0(%arg0: i32, %arg1: i32) -> (i32, i32, i32) {
    %c0_i32 = arith.constant 0 : i32
    %c0_i32_0 = arith.constant 0 : i32
    %c0_i32_1 = arith.constant 0 : i32
    return %arg0, %c0_i32, %c0_i32_0 : i32, i32, i32
  }
  func.func @transform_1(%arg0: i32, %arg1: i32) -> (i32, i32, i32) {
    %c0_i32 = arith.constant 0 : i32
    %c0_i32_0 = arith.constant 0 : i32
    return %arg0, %c0_i32, %arg1 : i32, i32, i32
  }
  func.func @transform_2(%arg0: i32, %arg1: i32) -> (i32, i32) {
    %c0_i32 = arith.constant 0 : i32
    %c0_i32_0 = arith.constant 0 : i32
    %c0_i32_1 = arith.constant 0 : i32
    return %c0_i32, %c0_i32_0 : i32, i32
  }
  func.func @transform_3(%arg0: i32, %arg1: i32) -> (i32, i32, i32) {
    %c0_i32 = arith.constant 0 : i32
    %c0_i32_0 = arith.constant 0 : i32
    return %arg0, %c0_i32, %arg1 : i32, i32, i32
  }
}

</mosaic_0001>

<llo_original>
// kernel: tpu_custom_call.1
$region0: #{tpu_custom_call.1}
  #allocation0 [shape = 'u32[]', space=smem, size = 0x4, offset = 0x4, fixed_abs, tag = 'smem constant byte address 0x4 - core index']
  #allocation1 [shape = 'u32[144,128]{1,0:T(1,128)}', space=vmem, size = 0x12000, scoped, tag = 'internal scratch']
  #allocation2 [shape = 'f32[36,64]{1,0:T(8,128)}', space=vmem, size = 0x5000, scoped, tag = 'scratch operand']
  %s0 = inlined_call_operand.hbm [shape: f32[2,4,256], index: 0, kind: input, shape index: {}]
  %s1 = inlined_call_operand.vmem [shape: f32[2,3,64], index: 1, kind: input, shape index: {}]
  %s2 = inlined_call_operand.vmem [shape: f32[4,36], index: 2, kind: input, shape index: {}]
  %s3 = inlined_call_operand.hbm [shape: f32[2,4,64], index: 3, kind: output, shape index: {}]
  %s4 = sld [smem:[#allocation0]]
  $region49: #{tpu_custom_call.1} parent=0
    _
  %s6 = ssub.s32 1, %s4
  %s7 = scalar_select 0, %s6, %s4
  $region1: #{tpu_custom_call.1} parent=0
    #allocation3 [shape = 'u8[8192]{0}', space=vmem, size = 0x2000, scoped, tag = 'input window, operand 0']
    #allocation4 [shape = 's32[2]{0}', space=sflag, size = 0x8, scoped, tag = 'scoped memory for tpu_custom_call.1']
    #allocation5 [shape = 's32[2]{0}', space=sflag, size = 0x8, scoped, tag = 'scoped memory for tpu_custom_call.1']
    #allocation6 [shape = 'u8[4096]{0}', space=vmem, size = 0x1000, scoped, tag = 'output window, operand 0']
    %8 = vsyncpa [#allocation4], 0
    %s9 = scalar_lea.sflag [#allocation4], 1
    %10 = vsyncpa %s9, 0
    %11 = vsyncpa [#allocation5], 0
    %s12 = scalar_lea.sflag [#allocation5], 1
    %13 = vsyncpa %s12, 0
    loop: start=0, step=1, limit=4
    $region2: #{tpu_custom_call.1} parent=1 // loop_pre_header
      _
    $region3: #{tpu_custom_call.1} parent=1 // loop_header
      %s15 = sphi 0, %s19
      %p16 = scmp.ge.s32.totalorder %s15, 4
      %s22 = sphi 0, %s34
      %s23 = sphi 0, %s30
      %s24 = sphi 0, %s22
      %s25 = sphi 0, %s23
      %s26 = sphi 0, %s24
      %s27 = sphi 0, %s25
      %s37 = sphi 0, %s39
      %s40 = sphi 0, %s37
      %s41 = sphi 0, %s40
      %s57 = sphi 0, %s41
      %s65 = sphi 0, %s67
      %s68 = sphi 0, %s65
      %s69 = sphi 0, %s68
      %s85 = sphi 0, %s69
      %s89 = sphi 0, %s89
      %s91 = sphi 0, %s89
      %s92 = sphi 0, %s91
      %s106 = sphi 0, %s92
      %s114 = sphi 0, %s116
      %s117 = sphi 0, %s114
      %s118 = sphi 0, %s117
      %s134 = sphi 0, %s118
    $region4: #{tpu_custom_call.1} parent=1 // loop_header_branch
      %18 = sbr.rel (%p16) target = $region8
    $region5: #{tpu_custom_call.1} parent=1 // loop_body
      %s20 = ssub.s32 %s15, 1
      %s21 = ssub.s32 %s15, 2
      %s28 = sadd.s32 1, %s23
      %p29 = scmp.ge.s32.totalorder %s28, 1
      %s30 = scalar_select %p29, 0, %s28
      %s31 = sadd.s32 1, %s22
      %s32 = scalar_select %p29, %s31, %s22
      %p33 = scmp.ge.s32.totalorder %s32, 2
      %s34 = scalar_select %p33, 0, %s32
      %s35 = ssub.s32 %s22, %s34
      %p36 = scmp.eq.s32.totalorder %s35, 0
      %s38 = sadd.s32 %s37, 1
      %s39 = scalar_select %p36, %s37, %s38
      %p42 = pneg %p36
      %p43 = scmp.eq.s32.totalorder %s15, 1
      %p44 = por %p42, %p43
      %p45 = scmp.ne.s32.totalorder %s37, %s40
      %p46 = scmp.eq.s32.totalorder %s15, 0
      %p47 = por %p45, %p46
      %p48 = scmp.ne.s32.totalorder %s37, %s40
      %p49 = scmp.eq.s32.totalorder %s20, 1
      %p50 = por %p48, %p49
      %p51 = scmp.ne.s32.totalorder %s40, %s41
      %p52 = scmp.eq.s32.totalorder %s20, 0
      %p53 = por %p51, %p52
      %p54 = scmp.ne.s32.totalorder %s40, %s41
      %p55 = scmp.eq.s32.totalorder %s21, 1
      %p56 = por %p54, %p55
      %p58 = scmp.ne.s32.totalorder %s41, %s57
      %p59 = scmp.eq.s32.totalorder %s21, 0
      %p60 = por %p58, %p59
      %s61 = ssub.s32 %s22, %s34
      %s62 = ssub.s32 %s23, %s30
      %s63 = sor.u32 %s61, %s62
      %p64 = scmp.eq.s32.totalorder %s63, 0
      %s66 = sadd.s32 %s65, 1
      %s67 = scalar_select %p64, %s65, %s66
      %p70 = pneg %p64
      %p71 = scmp.eq.s32.totalorder %s15, 1
      %p72 = por %p70, %p71
      %p73 = scmp.ne.s32.totalorder %s65, %s68
      %p74 = scmp.eq.s32.totalorder %s15, 0
      %p75 = por %p73, %p74
      %p76 = scmp.ne.s32.totalorder %s65, %s68
      %p77 = scmp.eq.s32.totalorder %s20, 1
      %p78 = por %p76, %p77
      %p79 = scmp.ne.s32.totalorder %s68, %s69
      %p80 = scmp.eq.s32.totalorder %s20, 0
      %p81 = por %p79, %p80
      %p82 = scmp.ne.s32.totalorder %s68, %s69
      %p83 = scmp.eq.s32.totalorder %s21, 1
      %p84 = por %p82, %p83
      %p86 = scmp.ne.s32.totalorder %s69, %s85
      %p87 = scmp.eq.s32.totalorder %s21, 0
      %p88 = por %p86, %p87
      %s90 = sadd.s32 %s89, 1
      %p93 = scmp.eq.s32.totalorder %s15, 1
      %p94 = scmp.ne.s32.totalorder %s89, %s91
      %p95 = scmp.eq.s32.totalorder %s15, 0
      %p96 = por %p94, %p95
      %p97 = scmp.ne.s32.totalorder %s89, %s91
      %p98 = scmp.eq.s32.totalorder %s20, 1
      %p99 = por %p97, %p98
      %p100 = scmp.ne.s32.totalorder %s91, %s92
      %p101 = scmp.eq.s32.totalorder %s20, 0
      %p102 = por %p100, %p101
      %p103 = scmp.ne.s32.totalorder %s91, %s92
      %p104 = scmp.eq.s32.totalorder %s21, 1
      %p105 = por %p103, %p104
      %p107 = scmp.ne.s32.totalorder %s92, %s106
      %p108 = scmp.eq.s32.totalorder %s21, 0
      %p109 = por %p107, %p108
      %s110 = ssub.s32 %s22, %s34
      %s111 = ssub.s32 %s23, %s30
      %s112 = sor.u32 %s110, %s111
      %p113 = scmp.eq.s32.totalorder %s112, 0
      %s115 = sadd.s32 %s114, 1
      %s116 = scalar_select %p113, %s114, %s115
      %p119 = pneg %p113
      %p120 = scmp.eq.s32.totalorder %s15, 1
      %p121 = por %p119, %p120
      %p122 = scmp.ne.s32.totalorder %s114, %s117
      %p123 = scmp.eq.s32.totalorder %s15, 0
      %p124 = por %p122, %p123
      %p125 = scmp.ne.s32.totalorder %s114, %s117
      %p126 = scmp.eq.s32.totalorder %s20, 1
      %p127 = por %p125, %p126
      %p128 = scmp.ne.s32.totalorder %s117, %s118
      %p129 = scmp.eq.s32.totalorder %s20, 0
      %p130 = por %p128, %p129
      %p131 = scmp.ne.s32.totalorder %s117, %s118
      %p132 = scmp.eq.s32.totalorder %s21, 1
      %p133 = por %p131, %p132
      %p135 = scmp.ne.s32.totalorder %s118, %s134
      %p136 = scmp.eq.s32.totalorder %s21, 0
      %p137 = por %p135, %p136
      %p138 = scmp.le.s32.totalorder 1, %s15
      %p139 = scmp.lt.s32.totalorder %s15, 3
      %p140 = pnand %p138, %p139
      %p141 = pneg %p140
      // Predicated region
      $region9: #{tpu_custom_call.1} parent=5 // pred_check
        _
      $region10: #{tpu_custom_call.1} parent=5 // pred_check_branch
        %143 = sbr.rel (%p140) target = $region12
      $region11: #{tpu_custom_call.1} parent=5 // pred_region
        %s144 = ssub.s32 %s15, 1
        // Predicated region
        $region13: #{tpu_custom_call.1} parent=11 // pred_check
          %p145 = pneg %p102
        $region14: #{tpu_custom_call.1} parent=11 // pred_check_branch
          %147 = sbr.rel (%p145) target = $region16
        $region15: #{tpu_custom_call.1} parent=11 // pred_region
          _
        $region16: #{tpu_custom_call.1} parent=11 // pred_fallthru
          _
      $region12: #{tpu_custom_call.1} parent=5 // pred_fallthru
        _
      %p148 = scmp.lt.s32.totalorder %s15, 2
      // Predicated region
      $region17: #{tpu_custom_call.1} parent=5 // pred_check
        %p149 = pneg %p148
      $region18: #{tpu_custom_call.1} parent=5 // pred_check_branch
        %151 = sbr.rel (%p149) target = $region20
      $region19: #{tpu_custom_call.1} parent=5 // pred_region
        // Predicated region
        $region21: #{tpu_custom_call.1} parent=19 // pred_check
          %p152 = pneg %p47
        $region22: #{tpu_custom_call.1} parent=19 // pred_check_branch
          %154 = sbr.rel (%p152) target = $region24
        $region23: #{tpu_custom_call.1} parent=19 // pred_region
          %s155 = sand.u32 %s37, 1
          %s156 = scalar_lea.sflag [#allocation4], %s155
          %s157 = sand.u32 %s37, 1
          %s158 = smul.addr %s157, 8
          %s159 = scalar_lea.vmem [#allocation3], %s158
          %s161 = ssub.s32 128, 128
          %162 = vsyncadd %s156, %s161
          %s163 = smul.addr %s22, 2
          %s164 = smul.addr %s163, 64
          %s165 = scalar_lea.hbm %s0, %s164
          %s167 = sshll.u32 %s159, 4
          %s168 = int_to_ptr.vmem [resolvable:$true] %s167
          %170 = dma.hbm_to_vmem [thread:$0]  %s165, 128, %s168, %s156
        $region24: #{tpu_custom_call.1} parent=19 // pred_fallthru
          _
        // Predicated region
        $region25: #{tpu_custom_call.1} parent=19 // pred_check
          %p171 = pneg %p75
        $region26: #{tpu_custom_call.1} parent=19 // pred_check_branch
          %173 = sbr.rel (%p171) target = $region28
        $region27: #{tpu_custom_call.1} parent=19 // pred_region
          %p174 = scmp.lt.s32.totalorder %s22, 1
          %s175 = scalar_select %p174, %s22, 1
          %p176 = scmp.lt.s32.totalorder %s23, 0
          %s177 = scalar_select %p176, %s23, 0
          %s178 = sadd.s32 %s177, %s175
          %s179 = smul.addr %s178, 4
          %s180 = scalar_lea.vmem %s1, %s179
        $region28: #{tpu_custom_call.1} parent=19 // pred_fallthru
          _
      $region20: #{tpu_custom_call.1} parent=5 // pred_fallthru
        _
      %p181 = scmp.le.s32.totalorder 1, %s15
      %p182 = scmp.lt.s32.totalorder %s15, 3
      %p183 = pnand %p181, %p182
      %p184 = pneg %p183
      // Predicated region
      $region29: #{tpu_custom_call.1} parent=5 // pred_check
        _
      $region30: #{tpu_custom_call.1} parent=5 // pred_check_branch
        %186 = sbr.rel (%p183) target = $region32
      $region31: #{tpu_custom_call.1} parent=5 // pred_region
        %s187 = ssub.s32 %s15, 1
        %s188 = sand.u32 %s40, 1
        %s189 = scalar_lea.sflag [#allocation4], %s188
        %s190 = sand.u32 %s40, 1
        %s191 = smul.addr %s190, 8
        %s192 = scalar_lea.vmem [#allocation3], %s191
        // Predicated region
        $region33: #{tpu_custom_call.1} parent=31 // pred_check
          %p193 = pneg %p53
        $region34: #{tpu_custom_call.1} parent=31 // pred_check_branch
          %195 = sbr.rel (%p193) target = $region36
        $region35: #{tpu_custom_call.1} parent=31 // pred_region
          %196 = dma.done %s189, 128
        $region36: #{tpu_custom_call.1} parent=31 // pred_fallthru
          _
        %s197 = sand.u32 %s40, 1
        %s198 = scalar_lea.sflag [#allocation4], %s197
        %s199 = sand.u32 %s40, 1
        %s200 = smul.addr %s199, 8
        %s201 = scalar_lea.vmem [#allocation3], %s200
        %p202 = pneg %p53
        %p203 = pneg %p50
        %p204 = scmp.lt.s32.totalorder %s24, 1
        %s205 = scalar_select %p204, %s24, 1
        %p206 = scmp.lt.s32.totalorder %s25, 0
        %s207 = scalar_select %p206, %s25, 0
        %s208 = sadd.s32 %s207, %s205
        %s209 = smul.addr %s208, 4
        %s210 = scalar_lea.vmem %s1, %s209
        %p211 = pneg %p81
        %p212 = pneg %p78
        %p213 = pneg %p102
        %p214 = pneg %p99
        %p215 = pneg %p130
        %p216 = pneg %p127
        %s217 = sand.u32 %s117, 1
        %s218 = scalar_lea.sflag [#allocation5], %s217
        %s219 = sand.u32 %s117, 1
        %s220 = smul.addr %s219, 4
        %s221 = scalar_lea.vmem [#allocation6], %s220
        %p222 = scmp.lt.s32.totalorder %s24, 1
        %s223 = scalar_select %p222, %s24, 1
        %p224 = scmp.lt.s32.totalorder %s25, 0
        %s225 = scalar_select %p224, %s25, 0
        %s226 = sadd.s32 %s225, %s223
        %s227 = smul.addr %s226, 4
        %s228 = scalar_lea.vmem %s1, %s227
        %v229 = vld [vmem:[%s192] sm:$0xff]
        %v230 = vld [vmem:[%s228] sm:$0x7]
        %v231 = vlaneseq
        %v232 = vshrl.u32 %v231, 7
        %v233 = vadd.s32 %v232, 8
        %v234 = vadd.s32 %v232, 16
        %v235 = vadd.s32 %v232, 24
        %v236 = vadd.s32 %v232, 32
        %v237 = vadd.s32 %v232, 40
        %v238 = vadd.s32 %v232, 48
        %v239 = vadd.s32 %v232, 56
        %v240 = vadd.s32 %v232, 64
        %v241 = vadd.s32 %v232, 72
        %v242 = vadd.s32 %v232, 80
        %v243 = vadd.s32 %v232, 88
        %v244 = vadd.s32 %v232, 96
        %v245 = vadd.s32 %v232, 104
        %v246 = vadd.s32 %v232, 112
        %v247 = vadd.s32 %v232, 120
        %v248 = vadd.s32 %v232, 128
        %v249 = vadd.s32 %v232, 136
        %v250 = vadd.s32 %v232, 144
        %v251 = vadd.s32 %v232, 152
        %v252 = vadd.s32 %v232, 160
        %v253 = vadd.s32 %v232, 168
        %v254 = vadd.s32 %v232, 176
        %v255 = vadd.s32 %v232, 184
        %v256 = vadd.s32 %v232, 192
        %v257 = vadd.s32 %v232, 200
        %v258 = vadd.s32 %v232, 208
        %v259 = vadd.s32 %v232, 216
        %v260 = vadd.s32 %v232, 224
        %v261 = vadd.s32 %v232, 232
        %v262 = vadd.s32 %v232, 240
        %v263 = vadd.s32 %v232, 248
        %v264 = vcvt.s32.f32 %v232
        %v265 = vcvt.s32.f32 %v233
        %v266 = vcvt.s32.f32 %v234
        %v267 = vcvt.s32.f32 %v235
        %v268 = vcvt.s32.f32 %v236
        %v269 = vcvt.s32.f32 %v237
        %v270 = vcvt.s32.f32 %v238
        %v271 = vcvt.s32.f32 %v239
        %v272 = vcvt.s32.f32 %v240
        %v273 = vcvt.s32.f32 %v241
        %v274 = vcvt.s32.f32 %v242
        %v275 = vcvt.s32.f32 %v243
        %v276 = vcvt.s32.f32 %v244
        %v277 = vcvt.s32.f32 %v245
        %v278 = vcvt.s32.f32 %v246
        %v279 = vcvt.s32.f32 %v247
        %v280 = vcvt.s32.f32 %v248
        %v281 = vcvt.s32.f32 %v249
        %v282 = vcvt.s32.f32 %v250
        %v283 = vcvt.s32.f32 %v251
        %v284 = vcvt.s32.f32 %v252
        %v285 = vcvt.s32.f32 %v253
        %v286 = vcvt.s32.f32 %v254
        %v287 = vcvt.s32.f32 %v255
        %v288 = vcvt.s32.f32 %v256
        %v289 = vcvt.s32.f32 %v257
        %v290 = vcvt.s32.f32 %v258
        %v291 = vcvt.s32.f32 %v259
        %v292 = vcvt.s32.f32 %v260
        %v293 = vcvt.s32.f32 %v261
        %v294 = vcvt.s32.f32 %v262
        %v295 = vcvt.s32.f32 %v263
        %v296 = vadd.f32 %v264, 0.5
        %v297 = vadd.f32 %v265, 0.5
        %v298 = vadd.f32 %v266, 0.5
        %v299 = vadd.f32 %v267, 0.5
        %v300 = vadd.f32 %v268, 0.5
        %v301 = vadd.f32 %v269, 0.5
        %v302 = vadd.f32 %v270, 0.5
        %v303 = vadd.f32 %v271, 0.5
        %v304 = vadd.f32 %v272, 0.5
        %v305 = vadd.f32 %v273, 0.5
        %v306 = vadd.f32 %v274, 0.5
        %v307 = vadd.f32 %v275, 0.5
        %v308 = vadd.f32 %v276, 0.5
        %v309 = vadd.f32 %v277, 0.5
        %v310 = vadd.f32 %v278, 0.5
        %v311 = vadd.f32 %v279, 0.5
        %v312 = vadd.f32 %v280, 0.5
        %v313 = vadd.f32 %v281, 0.5
        %v314 = vadd.f32 %v282, 0.5
        %v315 = vadd.f32 %v283, 0.5
        %v316 = vadd.f32 %v284, 0.5
        %v317 = vadd.f32 %v285, 0.5
        %v318 = vadd.f32 %v286, 0.5
        %v319 = vadd.f32 %v287, 0.5
        %v320 = vadd.f32 %v288, 0.5
        %v321 = vadd.f32 %v289, 0.5
        %v322 = vadd.f32 %v290, 0.5
        %v323 = vadd.f32 %v291, 0.5
        %v324 = vadd.f32 %v292, 0.5
        %v325 = vadd.f32 %v293, 0.5
        %v326 = vadd.f32 %v294, 0.5
        %v327 = vadd.f32 %v295, 0.5
        %v328 = vmul.f32 %v296, 0.0625
        %v329 = vmul.f32 %v297, 0.0625
        %v330 = vmul.f32 %v298, 0.0625
        %v331 = vmul.f32 %v299, 0.0625
        %v332 = vmul.f32 %v300, 0.0625
        %v333 = vmul.f32 %v301, 0.0625
        %v334 = vmul.f32 %v302, 0.0625
        %v335 = vmul.f32 %v303, 0.0625
        %v336 = vmul.f32 %v304, 0.0625
        %v337 = vmul.f32 %v305, 0.0625
        %v338 = vmul.f32 %v306, 0.0625
        %v339 = vmul.f32 %v307, 0.0625
        %v340 = vmul.f32 %v308, 0.0625
        %v341 = vmul.f32 %v309, 0.0625
        %v342 = vmul.f32 %v310, 0.0625
        %v343 = vmul.f32 %v311, 0.0625
        %v344 = vmul.f32 %v312, 0.0625
        %v345 = vmul.f32 %v313, 0.0625
        %v346 = vmul.f32 %v314, 0.0625
        %v347 = vmul.f32 %v315, 0.0625
        %v348 = vmul.f32 %v316, 0.0625
        %v349 = vmul.f32 %v317, 0.0625
        %v350 = vmul.f32 %v318, 0.0625
        %v351 = vmul.f32 %v319, 0.0625
        %v352 = vmul.f32 %v320, 0.0625
        %v353 = vmul.f32 %v321, 0.0625
        %v354 = vmul.f32 %v322, 0.0625
        %v355 = vmul.f32 %v323, 0.0625
        %v356 = vmul.f32 %v324, 0.0625
        %v357 = vmul.f32 %v325, 0.0625
        %v358 = vmul.f32 %v326, 0.0625
        %v359 = vmul.f32 %v327, 0.0625
        %v360 = vfloor.f32 %v328
        %v361 = vfloor.f32 %v329
        %v362 = vfloor.f32 %v330
        %v363 = vfloor.f32 %v331
        %v364 = vfloor.f32 %v332
        %v365 = vfloor.f32 %v333
        %v366 = vfloor.f32 %v334
        %v367 = vfloor.f32 %v335
        %v368 = vfloor.f32 %v336
        %v369 = vfloor.f32 %v337
        %v370 = vfloor.f32 %v338
        %v371 = vfloor.f32 %v339
        %v372 = vfloor.f32 %v340
        %v373 = vfloor.f32 %v341
        %v374 = vfloor.f32 %v342
        %v375 = vfloor.f32 %v343
        %v376 = vfloor.f32 %v344
        %v377 = vfloor.f32 %v345
        %v378 = vfloor.f32 %v346
        %v379 = vfloor.f32 %v347
        %v380 = vfloor.f32 %v348
        %v381 = vfloor.f32 %v349
        %v382 = vfloor.f32 %v350
        %v383 = vfloor.f32 %v351
        %v384 = vfloor.f32 %v352
        %v385 = vfloor.f32 %v353
        %v386 = vfloor.f32 %v354
        %v387 = vfloor.f32 %v355
        %v388 = vfloor.f32 %v356
        %v389 = vfloor.f32 %v357
        %v390 = vfloor.f32 %v358
        %v391 = vfloor.f32 %v359
        %v392 = vmul.f32 %v360, 16.0
        %v393 = vmul.f32 %v361, 16.0
        %v394 = vmul.f32 %v362, 16.0
        %v395 = vmul.f32 %v363, 16.0
        %v396 = vmul.f32 %v364, 16.0
        %v397 = vmul.f32 %v365, 16.0
        %v398 = vmul.f32 %v366, 16.0
        %v399 = vmul.f32 %v367, 16.0
        %v400 = vmul.f32 %v368, 16.0
        %v401 = vmul.f32 %v369, 16.0
        %v402 = vmul.f32 %v370, 16.0
        %v403 = vmul.f32 %v371, 16.0
        %v404 = vmul.f32 %v372, 16.0
        %v405 = vmul.f32 %v373, 16.0
        %v406 = vmul.f32 %v374, 16.0
        %v407 = vmul.f32 %v375, 16.0
        %v408 = vmul.f32 %v376, 16.0
        %v409 = vmul.f32 %v377, 16.0
        %v410 = vmul.f32 %v378, 16.0
        %v411 = vmul.f32 %v379, 16.0
        %v412 = vmul.f32 %v380, 16.0
        %v413 = vmul.f32 %v381, 16.0
        %v414 = vmul.f32 %v382, 16.0
        %v415 = vmul.f32 %v383, 16.0
        %v416 = vmul.f32 %v384, 16.0
        %v417 = vmul.f32 %v385, 16.0
        %v418 = vmul.f32 %v386, 16.0
        %v419 = vmul.f32 %v387, 16.0
        %v420 = vmul.f32 %v388, 16.0
        %v421 = vmul.f32 %v389, 16.0
        %v422 = vmul.f32 %v390, 16.0
        %v423 = vmul.f32 %v391, 16.0
        %v424 = vsub.f32 %v264, %v392
        %v425 = vsub.f32 %v265, %v393
        %v426 = vsub.f32 %v266, %v394
        %v427 = vsub.f32 %v267, %v395
        %v428 = vsub.f32 %v268, %v396
        %v429 = vsub.f32 %v269, %v397
        %v430 = vsub.f32 %v270, %v398
        %v431 = vsub.f32 %v271, %v399
        %v432 = vsub.f32 %v272, %v400
        %v433 = vsub.f32 %v273, %v401
        %v434 = vsub.f32 %v274, %v402
        %v435 = vsub.f32 %v275, %v403
        %v436 = vsub.f32 %v276, %v404
        %v437 = vsub.f32 %v277, %v405
        %v438 = vsub.f32 %v278, %v406
        %v439 = vsub.f32 %v279, %v407
        %v440 = vsub.f32 %v280, %v408
        %v441 = vsub.f32 %v281, %v409
        %v442 = vsub.f32 %v282, %v410
        %v443 = vsub.f32 %v283, %v411
        %v444 = vsub.f32 %v284, %v412
        %v445 = vsub.f32 %v285, %v413
        %v446 = vsub.f32 %v286, %v414
        %v447 = vsub.f32 %v287, %v415
        %v448 = vsub.f32 %v288, %v416
        %v449 = vsub.f32 %v289, %v417
        %v450 = vsub.f32 %v290, %v418
        %v451 = vsub.f32 %v291, %v419
        %v452 = vsub.f32 %v292, %v420
        %v453 = vsub.f32 %v293, %v421
        %v454 = vsub.f32 %v294, %v422
        %v455 = vsub.f32 %v295, %v423
        %v456 = vmul.f32 %v230, -1.0
        %v458 = vrot.slane %v456, 1
        %v460 = vadd.f32 %v230, %v458
        %v461 = vlaneseq
        %v462 = vshrl.u32 %v461, 7
        %v463 = vsub.s32 1, %v462
        %v464 = vrot.slane %v460, %v463
        %v465 = vsub.f32 %v464, %v424
        %v466 = vsub.f32 %v464, %v425
        %v467 = vsub.f32 %v464, %v426
        %v468 = vsub.f32 %v464, %v427
        %v469 = vsub.f32 %v464, %v428
        %v470 = vsub.f32 %v464, %v429
        %v471 = vsub.f32 %v464, %v430
        %v472 = vsub.f32 %v464, %v431
        %v473 = vsub.f32 %v464, %v432
        %v474 = vsub.f32 %v464, %v433
        %v475 = vsub.f32 %v464, %v434
        %v476 = vsub.f32 %v464, %v435
        %v477 = vsub.f32 %v464, %v436
        %v478 = vsub.f32 %v464, %v437
        %v479 = vsub.f32 %v464, %v438
        %v480 = vsub.f32 %v464, %v439
        %v481 = vsub.f32 %v464, %v440
        %v482 = vsub.f32 %v464, %v441
        %v483 = vsub.f32 %v464, %v442
        %v484 = vsub.f32 %v464, %v443
        %v485 = vsub.f32 %v464, %v444
        %v486 = vsub.f32 %v464, %v445
        %v487 = vsub.f32 %v464, %v446
        %v488 = vsub.f32 %v464, %v447
        %v489 = vsub.f32 %v464, %v448
        %v490 = vsub.f32 %v464, %v449
        %v491 = vsub.f32 %v464, %v450
        %v492 = vsub.f32 %v464, %v451
        %v493 = vsub.f32 %v464, %v452
        %v494 = vsub.f32 %v464, %v453
        %v495 = vsub.f32 %v464, %v454
        %v496 = vsub.f32 %v464, %v455
        %v497 = vand.u32 2147483647, %v465
        %v498 = vand.u32 2147483647, %v466
        %v499 = vand.u32 2147483647, %v467
        %v500 = vand.u32 2147483647, %v468
        %v501 = vand.u32 2147483647, %v469
        %v502 = vand.u32 2147483647, %v470
        %v503 = vand.u32 2147483647, %v471
        %v504 = vand.u32 2147483647, %v472
        %v505 = vand.u32 2147483647, %v473
        %v506 = vand.u32 2147483647, %v474
        %v507 = vand.u32 2147483647, %v475
        %v508 = vand.u32 2147483647, %v476
        %v509 = vand.u32 2147483647, %v477
        %v510 = vand.u32 2147483647, %v478
        %v511 = vand.u32 2147483647, %v479
        %v512 = vand.u32 2147483647, %v480
        %v513 = vand.u32 2147483647, %v481
        %v514 = vand.u32 2147483647, %v482
        %v515 = vand.u32 2147483647, %v483
        %v516 = vand.u32 2147483647, %v484
        %v517 = vand.u32 2147483647, %v485
        %v518 = vand.u32 2147483647, %v486
        %v519 = vand.u32 2147483647, %v487
        %v520 = vand.u32 2147483647, %v488
        %v521 = vand.u32 2147483647, %v489
        %v522 = vand.u32 2147483647, %v490
        %v523 = vand.u32 2147483647, %v491
        %v524 = vand.u32 2147483647, %v492
        %v525 = vand.u32 2147483647, %v493
        %v526 = vand.u32 2147483647, %v494
        %v527 = vand.u32 2147483647, %v495
        %v528 = vand.u32 2147483647, %v496
        %v529 = vsub.f32 1.0, %v497
        %v530 = vsub.f32 1.0, %v498
        %v531 = vsub.f32 1.0, %v499
        %v532 = vsub.f32 1.0, %v500
        %v533 = vsub.f32 1.0, %v501
        %v534 = vsub.f32 1.0, %v502
        %v535 = vsub.f32 1.0, %v503
        %v536 = vsub.f32 1.0, %v504
        %v537 = vsub.f32 1.0, %v505
        %v538 = vsub.f32 1.0, %v506
        %v539 = vsub.f32 1.0, %v507
        %v540 = vsub.f32 1.0, %v508
        %v541 = vsub.f32 1.0, %v509
        %v542 = vsub.f32 1.0, %v510
        %v543 = vsub.f32 1.0, %v511
        %v544 = vsub.f32 1.0, %v512
        %v545 = vsub.f32 1.0, %v513
        %v546 = vsub.f32 1.0, %v514
        %v547 = vsub.f32 1.0, %v515
        %v548 = vsub.f32 1.0, %v516
        %v549 = vsub.f32 1.0, %v517
        %v550 = vsub.f32 1.0, %v518
        %v551 = vsub.f32 1.0, %v519
        %v552 = vsub.f32 1.0, %v520
        %v553 = vsub.f32 1.0, %v521
        %v554 = vsub.f32 1.0, %v522
        %v555 = vsub.f32 1.0, %v523
        %v556 = vsub.f32 1.0, %v524
        %v557 = vsub.f32 1.0, %v525
        %v558 = vsub.f32 1.0, %v526
        %v559 = vsub.f32 1.0, %v527
        %v560 = vsub.f32 1.0, %v528
        %v561 = vmax.f32 %v529, 0.0
        %v562 = vmax.f32 %v530, 0.0
        %v563 = vmax.f32 %v531, 0.0
        %v564 = vmax.f32 %v532, 0.0
        %v565 = vmax.f32 %v533, 0.0
        %v566 = vmax.f32 %v534, 0.0
        %v567 = vmax.f32 %v535, 0.0
        %v568 = vmax.f32 %v536, 0.0
        %v569 = vmax.f32 %v537, 0.0
        %v570 = vmax.f32 %v538, 0.0
        %v571 = vmax.f32 %v539, 0.0
        %v572 = vmax.f32 %v540, 0.0
        %v573 = vmax.f32 %v541, 0.0
        %v574 = vmax.f32 %v542, 0.0
        %v575 = vmax.f32 %v543, 0.0
        %v576 = vmax.f32 %v544, 0.0
        %v577 = vmax.f32 %v545, 0.0
        %v578 = vmax.f32 %v546, 0.0
        %v579 = vmax.f32 %v547, 0.0
        %v580 = vmax.f32 %v548, 0.0
        %v581 = vmax.f32 %v549, 0.0
        %v582 = vmax.f32 %v550, 0.0
        %v583 = vmax.f32 %v551, 0.0
        %v584 = vmax.f32 %v552, 0.0
        %v585 = vmax.f32 %v553, 0.0
        %v586 = vmax.f32 %v554, 0.0
        %v587 = vmax.f32 %v555, 0.0
        %v588 = vmax.f32 %v556, 0.0
        %v589 = vmax.f32 %v557, 0.0
        %v590 = vmax.f32 %v558, 0.0
        %v591 = vmax.f32 %v559, 0.0
        %v592 = vmax.f32 %v560, 0.0
        %v593 = vmul.f32 %v230, 0.0
        %v595 = vrot.slane %v593, 1
        %v597 = vadd.f32 %v230, %v595
        %v598 = vlaneseq
        %v599 = vshrl.u32 %v598, 7
        %v600 = vsub.s32 1, %v599
        %v601 = vrot.slane %v597, %v600
        %v602 = vsub.f32 %v601, %v424
        %v603 = vsub.f32 %v601, %v425
        %v604 = vsub.f32 %v601, %v426
        %v605 = vsub.f32 %v601, %v427
        %v606 = vsub.f32 %v601, %v428
        %v607 = vsub.f32 %v601, %v429
        %v608 = vsub.f32 %v601, %v430
        %v609 = vsub.f32 %v601, %v431
        %v610 = vsub.f32 %v601, %v432
        %v611 = vsub.f32 %v601, %v433
        %v612 = vsub.f32 %v601, %v434
        %v613 = vsub.f32 %v601, %v435
        %v614 = vsub.f32 %v601, %v436
        %v615 = vsub.f32 %v601, %v437
        %v616 = vsub.f32 %v601, %v438
        %v617 = vsub.f32 %v601, %v439
        %v618 = vsub.f32 %v601, %v440
        %v619 = vsub.f32 %v601, %v441
        %v620 = vsub.f32 %v601, %v442
        %v621 = vsub.f32 %v601, %v443
        %v622 = vsub.f32 %v601, %v444
        %v623 = vsub.f32 %v601, %v445
        %v624 = vsub.f32 %v601, %v446
        %v625 = vsub.f32 %v601, %v447
        %v626 = vsub.f32 %v601, %v448
        %v627 = vsub.f32 %v601, %v449
        %v628 = vsub.f32 %v601, %v450
        %v629 = vsub.f32 %v601, %v451
        %v630 = vsub.f32 %v601, %v452
        %v631 = vsub.f32 %v601, %v453
        %v632 = vsub.f32 %v601, %v454
        %v633 = vsub.f32 %v601, %v455
        %v634 = vand.u32 2147483647, %v602
        %v635 = vand.u32 2147483647, %v603
        %v636 = vand.u32 2147483647, %v604
        %v637 = vand.u32 2147483647, %v605
        %v638 = vand.u32 2147483647, %v606
        %v639 = vand.u32 2147483647, %v607
        %v640 = vand.u32 2147483647, %v608
        %v641 = vand.u32 2147483647, %v609
        %v642 = vand.u32 2147483647, %v610
        %v643 = vand.u32 2147483647, %v611
        %v644 = vand.u32 2147483647, %v612
        %v645 = vand.u32 2147483647, %v613
        %v646 = vand.u32 2147483647, %v614
        %v647 = vand.u32 2147483647, %v615
        %v648 = vand.u32 2147483647, %v616
        %v649 = vand.u32 2147483647, %v617
        %v650 = vand.u32 2147483647, %v618
        %v651 = vand.u32 2147483647, %v619
        %v652 = vand.u32 2147483647, %v620
        %v653 = vand.u32 2147483647, %v621
        %v654 = vand.u32 2147483647, %v622
        %v655 = vand.u32 2147483647, %v623
        %v656 = vand.u32 2147483647, %v624
        %v657 = vand.u32 2147483647, %v625
        %v658 = vand.u32 2147483647, %v626
        %v659 = vand.u32 2147483647, %v627
        %v660 = vand.u32 2147483647, %v628
        %v661 = vand.u32 2147483647, %v629
        %v662 = vand.u32 2147483647, %v630
        %v663 = vand.u32 2147483647, %v631
        %v664 = vand.u32 2147483647, %v632
        %v665 = vand.u32 2147483647, %v633
        %v666 = vsub.f32 1.0, %v634
        %v667 = vsub.f32 1.0, %v635
        %v668 = vsub.f32 1.0, %v636
        %v669 = vsub.f32 1.0, %v637
        %v670 = vsub.f32 1.0, %v638
        %v671 = vsub.f32 1.0, %v639
        %v672 = vsub.f32 1.0, %v640
        %v673 = vsub.f32 1.0, %v641
        %v674 = vsub.f32 1.0, %v642
        %v675 = vsub.f32 1.0, %v643
        %v676 = vsub.f32 1.0, %v644
        %v677 = vsub.f32 1.0, %v645
        %v678 = vsub.f32 1.0, %v646
        %v679 = vsub.f32 1.0, %v647
        %v680 = vsub.f32 1.0, %v648
        %v681 = vsub.f32 1.0, %v649
        %v682 = vsub.f32 1.0, %v650
        %v683 = vsub.f32 1.0, %v651
        %v684 = vsub.f32 1.0, %v652
        %v685 = vsub.f32 1.0, %v653
        %v686 = vsub.f32 1.0, %v654
        %v687 = vsub.f32 1.0, %v655
        %v688 = vsub.f32 1.0, %v656
        %v689 = vsub.f32 1.0, %v657
        %v690 = vsub.f32 1.0, %v658
        %v691 = vsub.f32 1.0, %v659
        %v692 = vsub.f32 1.0, %v660
        %v693 = vsub.f32 1.0, %v661
        %v694 = vsub.f32 1.0, %v662
        %v695 = vsub.f32 1.0, %v663
        %v696 = vsub.f32 1.0, %v664
        %v697 = vsub.f32 1.0, %v665
        %v698 = vmax.f32 %v666, 0.0
        %v699 = vmax.f32 %v667, 0.0
        %v700 = vmax.f32 %v668, 0.0
        %v701 = vmax.f32 %v669, 0.0
        %v702 = vmax.f32 %v670, 0.0
        %v703 = vmax.f32 %v671, 0.0
        %v704 = vmax.f32 %v672, 0.0
        %v705 = vmax.f32 %v673, 0.0
        %v706 = vmax.f32 %v674, 0.0
        %v707 = vmax.f32 %v675, 0.0
        %v708 = vmax.f32 %v676, 0.0
        %v709 = vmax.f32 %v677, 0.0
        %v710 = vmax.f32 %v678, 0.0
        %v711 = vmax.f32 %v679, 0.0
        %v712 = vmax.f32 %v680, 0.0
        %v713 = vmax.f32 %v681, 0.0
        %v714 = vmax.f32 %v682, 0.0
        %v715 = vmax.f32 %v683, 0.0
        %v716 = vmax.f32 %v684, 0.0
        %v717 = vmax.f32 %v685, 0.0
        %v718 = vmax.f32 %v686, 0.0
        %v719 = vmax.f32 %v687, 0.0
        %v720 = vmax.f32 %v688, 0.0
        %v721 = vmax.f32 %v689, 0.0
        %v722 = vmax.f32 %v690, 0.0
        %v723 = vmax.f32 %v691, 0.0
        %v724 = vmax.f32 %v692, 0.0
        %v725 = vmax.f32 %v693, 0.0
        %v726 = vmax.f32 %v694, 0.0
        %v727 = vmax.f32 %v695, 0.0
        %v728 = vmax.f32 %v696, 0.0
        %v729 = vmax.f32 %v697, 0.0
        %v731 = vrot.slane %v230, 1
        %v733 = vadd.f32 %v230, %v731
        %v734 = vlaneseq
        %v735 = vshrl.u32 %v734, 7
        %v736 = vsub.s32 1, %v735
        %v737 = vrot.slane %v733, %v736
        %v738 = vsub.f32 %v737, %v424
        %v739 = vsub.f32 %v737, %v425
        %v740 = vsub.f32 %v737, %v426
        %v741 = vsub.f32 %v737, %v427
        %v742 = vsub.f32 %v737, %v428
        %v743 = vsub.f32 %v737, %v429
        %v744 = vsub.f32 %v737, %v430
        %v745 = vsub.f32 %v737, %v431
        %v746 = vsub.f32 %v737, %v432
        %v747 = vsub.f32 %v737, %v433
        %v748 = vsub.f32 %v737, %v434
        %v749 = vsub.f32 %v737, %v435
        %v750 = vsub.f32 %v737, %v436
        %v751 = vsub.f32 %v737, %v437
        %v752 = vsub.f32 %v737, %v438
        %v753 = vsub.f32 %v737, %v439
        %v754 = vsub.f32 %v737, %v440
        %v755 = vsub.f32 %v737, %v441
        %v756 = vsub.f32 %v737, %v442
        %v757 = vsub.f32 %v737, %v443
        %v758 = vsub.f32 %v737, %v444
        %v759 = vsub.f32 %v737, %v445
        %v760 = vsub.f32 %v737, %v446
        %v761 = vsub.f32 %v737, %v447
        %v762 = vsub.f32 %v737, %v448
        %v763 = vsub.f32 %v737, %v449
        %v764 = vsub.f32 %v737, %v450
        %v765 = vsub.f32 %v737, %v451
        %v766 = vsub.f32 %v737, %v452
        %v767 = vsub.f32 %v737, %v453
        %v768 = vsub.f32 %v737, %v454
        %v769 = vsub.f32 %v737, %v455
        %v770 = vand.u32 2147483647, %v738
        %v771 = vand.u32 2147483647, %v739
        %v772 = vand.u32 2147483647, %v740
        %v773 = vand.u32 2147483647, %v741
        %v774 = vand.u32 2147483647, %v742
        %v775 = vand.u32 2147483647, %v743
        %v776 = vand.u32 2147483647, %v744
        %v777 = vand.u32 2147483647, %v745
        %v778 = vand.u32 2147483647, %v746
        %v779 = vand.u32 2147483647, %v747
        %v780 = vand.u32 2147483647, %v748
        %v781 = vand.u32 2147483647, %v749
        %v782 = vand.u32 2147483647, %v750
        %v783 = vand.u32 2147483647, %v751
        %v784 = vand.u32 2147483647, %v752
        %v785 = vand.u32 2147483647, %v753
        %v786 = vand.u32 2147483647, %v754
        %v787 = vand.u32 2147483647, %v755
        %v788 = vand.u32 2147483647, %v756
        %v789 = vand.u32 2147483647, %v757
        %v790 = vand.u32 2147483647, %v758
        %v791 = vand.u32 2147483647, %v759
        %v792 = vand.u32 2147483647, %v760
        %v793 = vand.u32 2147483647, %v761
        %v794 = vand.u32 2147483647, %v762
        %v795 = vand.u32 2147483647, %v763
        %v796 = vand.u32 2147483647, %v764
        %v797 = vand.u32 2147483647, %v765
        %v798 = vand.u32 2147483647, %v766
        %v799 = vand.u32 2147483647, %v767
        %v800 = vand.u32 2147483647, %v768
        %v801 = vand.u32 2147483647, %v769
        %v802 = vsub.f32 1.0, %v770
        %v803 = vsub.f32 1.0, %v771
        %v804 = vsub.f32 1.0, %v772
        %v805 = vsub.f32 1.0, %v773
        %v806 = vsub.f32 1.0, %v774
        %v807 = vsub.f32 1.0, %v775
        %v808 = vsub.f32 1.0, %v776
        %v809 = vsub.f32 1.0, %v777
        %v810 = vsub.f32 1.0, %v778
        %v811 = vsub.f32 1.0, %v779
        %v812 = vsub.f32 1.0, %v780
        %v813 = vsub.f32 1.0, %v781
        %v814 = vsub.f32 1.0, %v782
        %v815 = vsub.f32 1.0, %v783
        %v816 = vsub.f32 1.0, %v784
        %v817 = vsub.f32 1.0, %v785
        %v818 = vsub.f32 1.0, %v786
        %v819 = vsub.f32 1.0, %v787
        %v820 = vsub.f32 1.0, %v788
        %v821 = vsub.f32 1.0, %v789
        %v822 = vsub.f32 1.0, %v790
        %v823 = vsub.f32 1.0, %v791
        %v824 = vsub.f32 1.0, %v792
        %v825 = vsub.f32 1.0, %v793
        %v826 = vsub.f32 1.0, %v794
        %v827 = vsub.f32 1.0, %v795
        %v828 = vsub.f32 1.0, %v796
        %v829 = vsub.f32 1.0, %v797
        %v830 = vsub.f32 1.0, %v798
        %v831 = vsub.f32 1.0, %v799
        %v832 = vsub.f32 1.0, %v800
        %v833 = vsub.f32 1.0, %v801
        %v834 = vmax.f32 %v802, 0.0
        %v835 = vmax.f32 %v803, 0.0
        %v836 = vmax.f32 %v804, 0.0
        %v837 = vmax.f32 %v805, 0.0
        %v838 = vmax.f32 %v806, 0.0
        %v839 = vmax.f32 %v807, 0.0
        %v840 = vmax.f32 %v808, 0.0
        %v841 = vmax.f32 %v809, 0.0
        %v842 = vmax.f32 %v810, 0.0
        %v843 = vmax.f32 %v811, 0.0
        %v844 = vmax.f32 %v812, 0.0
        %v845 = vmax.f32 %v813, 0.0
        %v846 = vmax.f32 %v814, 0.0
        %v847 = vmax.f32 %v815, 0.0
        %v848 = vmax.f32 %v816, 0.0
        %v849 = vmax.f32 %v817, 0.0
        %v850 = vmax.f32 %v818, 0.0
        %v851 = vmax.f32 %v819, 0.0
        %v852 = vmax.f32 %v820, 0.0
        %v853 = vmax.f32 %v821, 0.0
        %v854 = vmax.f32 %v822, 0.0
        %v855 = vmax.f32 %v823, 0.0
        %v856 = vmax.f32 %v824, 0.0
        %v857 = vmax.f32 %v825, 0.0
        %v858 = vmax.f32 %v826, 0.0
        %v859 = vmax.f32 %v827, 0.0
        %v860 = vmax.f32 %v828, 0.0
        %v861 = vmax.f32 %v829, 0.0
        %v862 = vmax.f32 %v830, 0.0
        %v863 = vmax.f32 %v831, 0.0
        %v864 = vmax.f32 %v832, 0.0
        %v865 = vmax.f32 %v833, 0.0
        %v866 = vrot.slane %v456, 2
        %v868 = vadd.f32 %v230, %v866
        %v869 = vlaneseq
        %v870 = vshrl.u32 %v869, 7
        %v871 = vsub.s32 0, %v870
        %v872 = vrot.slane %v868, %v871
        %v873 = vsub.f32 %v872, %v360
        %v874 = vsub.f32 %v872, %v361
        %v875 = vsub.f32 %v872, %v362
        %v876 = vsub.f32 %v872, %v363
        %v877 = vsub.f32 %v872, %v364
        %v878 = vsub.f32 %v872, %v365
        %v879 = vsub.f32 %v872, %v366
        %v880 = vsub.f32 %v872, %v367
        %v881 = vsub.f32 %v872, %v368
        %v882 = vsub.f32 %v872, %v369
        %v883 = vsub.f32 %v872, %v370
        %v884 = vsub.f32 %v872, %v371
        %v885 = vsub.f32 %v872, %v372
        %v886 = vsub.f32 %v872, %v373
        %v887 = vsub.f32 %v872, %v374
        %v888 = vsub.f32 %v872, %v375
        %v889 = vsub.f32 %v872, %v376
        %v890 = vsub.f32 %v872, %v377
        %v891 = vsub.f32 %v872, %v378
        %v892 = vsub.f32 %v872, %v379
        %v893 = vsub.f32 %v872, %v380
        %v894 = vsub.f32 %v872, %v381
        %v895 = vsub.f32 %v872, %v382
        %v896 = vsub.f32 %v872, %v383
        %v897 = vsub.f32 %v872, %v384
        %v898 = vsub.f32 %v872, %v385
        %v899 = vsub.f32 %v872, %v386
        %v900 = vsub.f32 %v872, %v387
        %v901 = vsub.f32 %v872, %v388
        %v902 = vsub.f32 %v872, %v389
        %v903 = vsub.f32 %v872, %v390
        %v904 = vsub.f32 %v872, %v391
        %v905 = vand.u32 2147483647, %v873
        %v906 = vand.u32 2147483647, %v874
        %v907 = vand.u32 2147483647, %v875
        %v908 = vand.u32 2147483647, %v876
        %v909 = vand.u32 2147483647, %v877
        %v910 = vand.u32 2147483647, %v878
        %v911 = vand.u32 2147483647, %v879
        %v912 = vand.u32 2147483647, %v880
        %v913 = vand.u32 2147483647, %v881
        %v914 = vand.u32 2147483647, %v882
        %v915 = vand.u32 2147483647, %v883
        %v916 = vand.u32 2147483647, %v884
        %v917 = vand.u32 2147483647, %v885
        %v918 = vand.u32 2147483647, %v886
        %v919 = vand.u32 2147483647, %v887
        %v920 = vand.u32 2147483647, %v888
        %v921 = vand.u32 2147483647, %v889
        %v922 = vand.u32 2147483647, %v890
        %v923 = vand.u32 2147483647, %v891
        %v924 = vand.u32 2147483647, %v892
        %v925 = vand.u32 2147483647, %v893
        %v926 = vand.u32 2147483647, %v894
        %v927 = vand.u32 2147483647, %v895
        %v928 = vand.u32 2147483647, %v896
        %v929 = vand.u32 2147483647, %v897
        %v930 = vand.u32 2147483647, %v898
        %v931 = vand.u32 2147483647, %v899
        %v932 = vand.u32 2147483647, %v900
        %v933 = vand.u32 2147483647, %v901
        %v934 = vand.u32 2147483647, %v902
        %v935 = vand.u32 2147483647, %v903
        %v936 = vand.u32 2147483647, %v904
        %v937 = vsub.f32 1.0, %v905
        %v938 = vsub.f32 1.0, %v906
        %v939 = vsub.f32 1.0, %v907
        %v940 = vsub.f32 1.0, %v908
        %v941 = vsub.f32 1.0, %v909
        %v942 = vsub.f32 1.0, %v910
        %v943 = vsub.f32 1.0, %v911
        %v944 = vsub.f32 1.0, %v912
        %v945 = vsub.f32 1.0, %v913
        %v946 = vsub.f32 1.0, %v914
        %v947 = vsub.f32 1.0, %v915
        %v948 = vsub.f32 1.0, %v916
        %v949 = vsub.f32 1.0, %v917
        %v950 = vsub.f32 1.0, %v918
        %v951 = vsub.f32 1.0, %v919
        %v952 = vsub.f32 1.0, %v920
        %v953 = vsub.f32 1.0, %v921
        %v954 = vsub.f32 1.0, %v922
        %v955 = vsub.f32 1.0, %v923
        %v956 = vsub.f32 1.0, %v924
        %v957 = vsub.f32 1.0, %v925
        %v958 = vsub.f32 1.0, %v926
        %v959 = vsub.f32 1.0, %v927
        %v960 = vsub.f32 1.0, %v928
        %v961 = vsub.f32 1.0, %v929
        %v962 = vsub.f32 1.0, %v930
        %v963 = vsub.f32 1.0, %v931
        %v964 = vsub.f32 1.0, %v932
        %v965 = vsub.f32 1.0, %v933
        %v966 = vsub.f32 1.0, %v934
        %v967 = vsub.f32 1.0, %v935
        %v968 = vsub.f32 1.0, %v936
        %v969 = vmax.f32 %v937, 0.0
        %v970 = vmax.f32 %v938, 0.0
        %v971 = vmax.f32 %v939, 0.0
        %v972 = vmax.f32 %v940, 0.0
        %v973 = vmax.f32 %v941, 0.0
        %v974 = vmax.f32 %v942, 0.0
        %v975 = vmax.f32 %v943, 0.0
        %v976 = vmax.f32 %v944, 0.0
        %v977 = vmax.f32 %v945, 0.0
        %v978 = vmax.f32 %v946, 0.0
        %v979 = vmax.f32 %v947, 0.0
        %v980 = vmax.f32 %v948, 0.0
        %v981 = vmax.f32 %v949, 0.0
        %v982 = vmax.f32 %v950, 0.0
        %v983 = vmax.f32 %v951, 0.0
        %v984 = vmax.f32 %v952, 0.0
        %v985 = vmax.f32 %v953, 0.0
        %v986 = vmax.f32 %v954, 0.0
        %v987 = vmax.f32 %v955, 0.0
        %v988 = vmax.f32 %v956, 0.0
        %v989 = vmax.f32 %v957, 0.0
        %v990 = vmax.f32 %v958, 0.0
        %v991 = vmax.f32 %v959, 0.0
        %v992 = vmax.f32 %v960, 0.0
        %v993 = vmax.f32 %v961, 0.0
        %v994 = vmax.f32 %v962, 0.0
        %v995 = vmax.f32 %v963, 0.0
        %v996 = vmax.f32 %v964, 0.0
        %v997 = vmax.f32 %v965, 0.0
        %v998 = vmax.f32 %v966, 0.0
        %v999 = vmax.f32 %v967, 0.0
        %v1000 = vmax.f32 %v968, 0.0
        %v1001 = vmul.f32 %v969, %v561
        %v1002 = vmul.f32 %v970, %v562
        %v1003 = vmul.f32 %v971, %v563
        %v1004 = vmul.f32 %v972, %v564
        %v1005 = vmul.f32 %v973, %v565
        %v1006 = vmul.f32 %v974, %v566
        %v1007 = vmul.f32 %v975, %v567
        %v1008 = vmul.f32 %v976, %v568
        %v1009 = vmul.f32 %v977, %v569
        %v1010 = vmul.f32 %v978, %v570
        %v1011 = vmul.f32 %v979, %v571
        %v1012 = vmul.f32 %v980, %v572
        %v1013 = vmul.f32 %v981, %v573
        %v1014 = vmul.f32 %v982, %v574
        %v1015 = vmul.f32 %v983, %v575
        %v1016 = vmul.f32 %v984, %v576
        %v1017 = vmul.f32 %v985, %v577
        %v1018 = vmul.f32 %v986, %v578
        %v1019 = vmul.f32 %v987, %v579
        %v1020 = vmul.f32 %v988, %v580
        %v1021 = vmul.f32 %v989, %v581
        %v1022 = vmul.f32 %v990, %v582
        %v1023 = vmul.f32 %v991, %v583
        %v1024 = vmul.f32 %v992, %v584
        %v1025 = vmul.f32 %v993, %v585
        %v1026 = vmul.f32 %v994, %v586
        %v1027 = vmul.f32 %v995, %v587
        %v1028 = vmul.f32 %v996, %v588
        %v1029 = vmul.f32 %v997, %v589
        %v1030 = vmul.f32 %v998, %v590
        %v1031 = vmul.f32 %v999, %v591
        %v1032 = vmul.f32 %v1000, %v592
        %v1034 = vcombine.high %v229, %v229
        %1036 = vmatprep.subr.mxu0 0.0
        %1037 = vmatpush1.msra.mxu0 %v1001
        %1038 = vmatprep.subr.mxu0 0.0
        %1039 = vmatpush1.msra.mxu0 %v1002
        %1040 = vmatprep.subr.mxu0 0.0
        %1041 = vmatpush1.msra.mxu0 %v1003
        %1042 = vmatprep.subr.mxu0 0.0
        %1043 = vmatpush1.msra.mxu0 %v1004
        %1044 = vmatprep.subr.mxu0 0.0
        %1045 = vmatpush1.msra.mxu0 %v1005
        %1046 = vmatprep.subr.mxu0 0.0
        %1047 = vmatpush1.msra.mxu0 %v1006
        %1048 = vmatprep.subr.mxu0 0.0
        %1049 = vmatpush1.msra.mxu0 %v1007
        %1050 = vmatprep.subr.mxu0 0.0
        %1051 = vmatpush1.msra.mxu0 %v1008
        %1052 = vmatprep.subr.mxu0 0.0
        %1053 = vmatpush1.msra.mxu0 %v1009
        %1054 = vmatprep.subr.mxu0 0.0
        %1055 = vmatpush1.msra.mxu0 %v1010
        %1056 = vmatprep.subr.mxu0 0.0
        %1057 = vmatpush1.msra.mxu0 %v1011
        %1058 = vmatprep.subr.mxu0 0.0
        %1059 = vmatpush1.msra.mxu0 %v1012
        %1060 = vmatprep.subr.mxu0 0.0
        %1061 = vmatpush1.msra.mxu0 %v1013
        %1062 = vmatprep.subr.mxu0 0.0
        %1063 = vmatpush1.msra.mxu0 %v1014
        %1064 = vmatprep.subr.mxu0 0.0
        %1065 = vmatpush1.msra.mxu0 %v1015
        %1066 = vmatprep.subr.mxu0 0.0
        %1067 = vmatpush1.msra.mxu0 %v1016
        %1068 = vmatprep.subr.mxu0 0.0
        %1069 = vmatpush1.msra.mxu0 %v1017
        %1070 = vmatprep.subr.mxu0 0.0
        %1071 = vmatpush1.msra.mxu0 %v1018
        %1072 = vmatprep.subr.mxu0 0.0
        %1073 = vmatpush1.msra.mxu0 %v1019
        %1074 = vmatprep.subr.mxu0 0.0
        %1075 = vmatpush1.msra.mxu0 %v1020
        %1076 = vmatprep.subr.mxu0 0.0
        %1077 = vmatpush1.msra.mxu0 %v1021
        %1078 = vmatprep.subr.mxu0 0.0
        %1079 = vmatpush1.msra.mxu0 %v1022
        %1080 = vmatprep.subr.mxu0 0.0
        %1081 = vmatpush1.msra.mxu0 %v1023
        %1082 = vmatprep.subr.mxu0 0.0
        %1083 = vmatpush1.msra.mxu0 %v1024
        %1084 = vmatprep.subr.mxu0 0.0
        %1085 = vmatpush1.msra.mxu0 %v1025
        %1086 = vmatprep.subr.mxu0 0.0
        %1087 = vmatpush1.msra.mxu0 %v1026
        %1088 = vmatprep.subr.mxu0 0.0
        %1089 = vmatpush1.msra.mxu0 %v1027
        %1090 = vmatprep.subr.mxu0 0.0
        %1091 = vmatpush1.msra.mxu0 %v1028
        %1092 = vmatprep.subr.mxu0 0.0
        %1093 = vmatpush1.msra.mxu0 %v1029
        %1094 = vmatprep.subr.mxu0 0.0
        %1095 = vmatpush1.msra.mxu0 %v1030
        %1096 = vmatprep.subr.mxu0 0.0
        %1097 = vmatpush1.msra.mxu0 %v1031
        %1098 = vmatprep.subr.mxu0 0.0
        %1099 = vmatpush1.msra.mxu0 %v1032
        %1100 = vmatprep.mubr.f32.mxu0 %v1034
        %1101 = vmatmul.mubr.f32.gmra.mrb[0].mxu0 %v229
        %v1102 = vpop.f32.mrb[0].mxu0
        %v1103 = vadd.f32 0.0, %v1102
        %v1104 = vpop.f32.mrb[0].mxu0
        %1105 = vdwg.mxu0
        %vm1106 = vcmask 519168
        %1107 = vst.msk [vmem:[#allocation2] sm:$0xf] %vm1106, %v1103
        %v1108 = vmul.f32 %v969, %v698
        %v1109 = vmul.f32 %v970, %v699
        %v1110 = vmul.f32 %v971, %v700
        %v1111 = vmul.f32 %v972, %v701
        %v1112 = vmul.f32 %v973, %v702
        %v1113 = vmul.f32 %v974, %v703
        %v1114 = vmul.f32 %v975, %v704
        %v1115 = vmul.f32 %v976, %v705
        %v1116 = vmul.f32 %v977, %v706
        %v1117 = vmul.f32 %v978, %v707
        %v1118 = vmul.f32 %v979, %v708
        %v1119 = vmul.f32 %v980, %v709
        %v1120 = vmul.f32 %v981, %v710
        %v1121 = vmul.f32 %v982, %v711
        %v1122 = vmul.f32 %v983, %v712
        %v1123 = vmul.f32 %v984, %v713
        %v1124 = vmul.f32 %v985, %v714
        %v1125 = vmul.f32 %v986, %v715
        %v1126 = vmul.f32 %v987, %v716
        %v1127 = vmul.f32 %v988, %v717
        %v1128 = vmul.f32 %v989, %v718
        %v1129 = vmul.f32 %v990, %v719
        %v1130 = vmul.f32 %v991, %v720
        %v1131 = vmul.f32 %v992, %v721
        %v1132 = vmul.f32 %v993, %v722
        %v1133 = vmul.f32 %v994, %v723
        %v1134 = vmul.f32 %v995, %v724
        %v1135 = vmul.f32 %v996, %v725
        %v1136 = vmul.f32 %v997, %v726
        %v1137 = vmul.f32 %v998, %v727
        %v1138 = vmul.f32 %v999, %v728
        %v1139 = vmul.f32 %v1000, %v729
        %1140 = vmatprep.subr.mxu0 0.0
        %1141 = vmatpush1.msra.mxu0 %v1108
        %1142 = vmatprep.subr.mxu0 0.0
        %1143 = vmatpush1.msra.mxu0 %v1109
        %1144 = vmatprep.subr.mxu0 0.0
        %1145 = vmatpush1.msra.mxu0 %v1110
        %1146 = vmatprep.subr.mxu0 0.0
        %1147 = vmatpush1.msra.mxu0 %v1111
        %1148 = vmatprep.subr.mxu0 0.0
        %1149 = vmatpush1.msra.mxu0 %v1112
        %1150 = vmatprep.subr.mxu0 0.0
        %1151 = vmatpush1.msra.mxu0 %v1113
        %1152 = vmatprep.subr.mxu0 0.0
        %1153 = vmatpush1.msra.mxu0 %v1114
        %1154 = vmatprep.subr.mxu0 0.0
        %1155 = vmatpush1.msra.mxu0 %v1115
        %1156 = vmatprep.subr.mxu0 0.0
        %1157 = vmatpush1.msra.mxu0 %v1116
        %1158 = vmatprep.subr.mxu0 0.0
        %1159 = vmatpush1.msra.mxu0 %v1117
        %1160 = vmatprep.subr.mxu0 0.0
        %1161 = vmatpush1.msra.mxu0 %v1118
        %1162 = vmatprep.subr.mxu0 0.0
        %1163 = vmatpush1.msra.mxu0 %v1119
        %1164 = vmatprep.subr.mxu0 0.0
        %1165 = vmatpush1.msra.mxu0 %v1120
        %1166 = vmatprep.subr.mxu0 0.0
        %1167 = vmatpush1.msra.mxu0 %v1121
        %1168 = vmatprep.subr.mxu0 0.0
        %1169 = vmatpush1.msra.mxu0 %v1122
        %1170 = vmatprep.subr.mxu0 0.0
        %1171 = vmatpush1.msra.mxu0 %v1123
        %1172 = vmatprep.subr.mxu0 0.0
        %1173 = vmatpush1.msra.mxu0 %v1124
        %1174 = vmatprep.subr.mxu0 0.0
        %1175 = vmatpush1.msra.mxu0 %v1125
        %1176 = vmatprep.subr.mxu0 0.0
        %1177 = vmatpush1.msra.mxu0 %v1126
        %1178 = vmatprep.subr.mxu0 0.0
        %1179 = vmatpush1.msra.mxu0 %v1127
        %1180 = vmatprep.subr.mxu0 0.0
        %1181 = vmatpush1.msra.mxu0 %v1128
        %1182 = vmatprep.subr.mxu0 0.0
        %1183 = vmatpush1.msra.mxu0 %v1129
        %1184 = vmatprep.subr.mxu0 0.0
        %1185 = vmatpush1.msra.mxu0 %v1130
        %1186 = vmatprep.subr.mxu0 0.0
        %1187 = vmatpush1.msra.mxu0 %v1131
        %1188 = vmatprep.subr.mxu0 0.0
        %1189 = vmatpush1.msra.mxu0 %v1132
        %1190 = vmatprep.subr.mxu0 0.0
        %1191 = vmatpush1.msra.mxu0 %v1133
        %1192 = vmatprep.subr.mxu0 0.0
        %1193 = vmatpush1.msra.mxu0 %v1134
        %1194 = vmatprep.subr.mxu0 0.0
        %1195 = vmatpush1.msra.mxu0 %v1135
        %1196 = vmatprep.subr.mxu0 0.0
        %1197 = vmatpush1.msra.mxu0 %v1136
        %1198 = vmatprep.subr.mxu0 0.0
        %1199 = vmatpush1.msra.mxu0 %v1137
        %1200 = vmatprep.subr.mxu0 0.0
        %1201 = vmatpush1.msra.mxu0 %v1138
        %1202 = vmatprep.subr.mxu0 0.0
        %1203 = vmatpush1.msra.mxu0 %v1139
        %1204 = vmatprep.mubr.f32.mxu0 %v1034
        %1205 = vmatmul.mubr.f32.gmra.mrb[0].mxu0 %v229
        %v1206 = vpop.f32.mrb[0].mxu0
        %v1207 = vadd.f32 0.0, %v1206
        %v1208 = vpop.f32.mrb[0].mxu0
        %1209 = vdwg.mxu0
        %1210 = vst.msk [vmem:[#allocation2 + $0x4] sm:$0xf] %vm1106, %v1207
        %v1211 = vmul.f32 %v969, %v834
        %v1212 = vmul.f32 %v970, %v835
        %v1213 = vmul.f32 %v971, %v836
        %v1214 = vmul.f32 %v972, %v837
        %v1215 = vmul.f32 %v973, %v838
        %v1216 = vmul.f32 %v974, %v839
        %v1217 = vmul.f32 %v975, %v840
        %v1218 = vmul.f32 %v976, %v841
        %v1219 = vmul.f32 %v977, %v842
        %v1220 = vmul.f32 %v978, %v843
        %v1221 = vmul.f32 %v979, %v844
        %v1222 = vmul.f32 %v980, %v845
        %v1223 = vmul.f32 %v981, %v846
        %v1224 = vmul.f32 %v982, %v847
        %v1225 = vmul.f32 %v983, %v848
        %v1226 = vmul.f32 %v984, %v849
        %v1227 = vmul.f32 %v985, %v850
        %v1228 = vmul.f32 %v986, %v851
        %v1229 = vmul.f32 %v987, %v852
        %v1230 = vmul.f32 %v988, %v853
        %v1231 = vmul.f32 %v989, %v854
        %v1232 = vmul.f32 %v990, %v855
        %v1233 = vmul.f32 %v991, %v856
        %v1234 = vmul.f32 %v992, %v857
        %v1235 = vmul.f32 %v993, %v858
        %v1236 = vmul.f32 %v994, %v859
        %v1237 = vmul.f32 %v995, %v860
        %v1238 = vmul.f32 %v996, %v861
        %v1239 = vmul.f32 %v997, %v862
        %v1240 = vmul.f32 %v998, %v863
        %v1241 = vmul.f32 %v999, %v864
        %v1242 = vmul.f32 %v1000, %v865
        %1243 = vmatprep.subr.mxu0 0.0
        %1244 = vmatpush1.msra.mxu0 %v1211
        %1245 = vmatprep.subr.mxu0 0.0
        %1246 = vmatpush1.msra.mxu0 %v1212
        %1247 = vmatprep.subr.mxu0 0.0
        %1248 = vmatpush1.msra.mxu0 %v1213
        %1249 = vmatprep.subr.mxu0 0.0
        %1250 = vmatpush1.msra.mxu0 %v1214
        %1251 = vmatprep.subr.mxu0 0.0
        %1252 = vmatpush1.msra.mxu0 %v1215
        %1253 = vmatprep.subr.mxu0 0.0
        %1254 = vmatpush1.msra.mxu0 %v1216
        %1255 = vmatprep.subr.mxu0 0.0
        %1256 = vmatpush1.msra.mxu0 %v1217
        %1257 = vmatprep.subr.mxu0 0.0
        %1258 = vmatpush1.msra.mxu0 %v1218
        %1259 = vmatprep.subr.mxu0 0.0
        %1260 = vmatpush1.msra.mxu0 %v1219
        %1261 = vmatprep.subr.mxu0 0.0
        %1262 = vmatpush1.msra.mxu0 %v1220
        %1263 = vmatprep.subr.mxu0 0.0
        %1264 = vmatpush1.msra.mxu0 %v1221
        %1265 = vmatprep.subr.mxu0 0.0
        %1266 = vmatpush1.msra.mxu0 %v1222
        %1267 = vmatprep.subr.mxu0 0.0
        %1268 = vmatpush1.msra.mxu0 %v1223
        %1269 = vmatprep.subr.mxu0 0.0
        %1270 = vmatpush1.msra.mxu0 %v1224
        %1271 = vmatprep.subr.mxu0 0.0
        %1272 = vmatpush1.msra.mxu0 %v1225
        %1273 = vmatprep.subr.mxu0 0.0
        %1274 = vmatpush1.msra.mxu0 %v1226
        %1275 = vmatprep.subr.mxu0 0.0
        %1276 = vmatpush1.msra.mxu0 %v1227
        %1277 = vmatprep.subr.mxu0 0.0
        %1278 = vmatpush1.msra.mxu0 %v1228
        %1279 = vmatprep.subr.mxu0 0.0
        %1280 = vmatpush1.msra.mxu0 %v1229
        %1281 = vmatprep.subr.mxu0 0.0
        %1282 = vmatpush1.msra.mxu0 %v1230
        %1283 = vmatprep.subr.mxu0 0.0
        %1284 = vmatpush1.msra.mxu0 %v1231
        %1285 = vmatprep.subr.mxu0 0.0
        %1286 = vmatpush1.msra.mxu0 %v1232
        %1287 = vmatprep.subr.mxu0 0.0
        %1288 = vmatpush1.msra.mxu0 %v1233
        %1289 = vmatprep.subr.mxu0 0.0
        %1290 = vmatpush1.msra.mxu0 %v1234
        %1291 = vmatprep.subr.mxu0 0.0
        %1292 = vmatpush1.msra.mxu0 %v1235
        %1293 = vmatprep.subr.mxu0 0.0
        %1294 = vmatpush1.msra.mxu0 %v1236
        %1295 = vmatprep.subr.mxu0 0.0
        %1296 = vmatpush1.msra.mxu0 %v1237
        %1297 = vmatprep.subr.mxu0 0.0
        %1298 = vmatpush1.msra.mxu0 %v1238
        %1299 = vmatprep.subr.mxu0 0.0
        %1300 = vmatpush1.msra.mxu0 %v1239
        %1301 = vmatprep.subr.mxu0 0.0
        %1302 = vmatpush1.msra.mxu0 %v1240
        %1303 = vmatprep.subr.mxu0 0.0
        %1304 = vmatpush1.msra.mxu0 %v1241
        %1305 = vmatprep.subr.mxu0 0.0
        %1306 = vmatpush1.msra.mxu0 %v1242
        %1307 = vmatprep.mubr.f32.mxu0 %v1034
        %1308 = vmatmul.mubr.f32.gmra.mrb[0].mxu0 %v229
        %v1309 = vpop.f32.mrb[0].mxu0
        %v1310 = vadd.f32 0.0, %v1309
        %v1311 = vpop.f32.mrb[0].mxu0
        %1312 = vdwg.mxu0
        %1313 = vst.msk [vmem:[#allocation2 + $0x8] sm:$0xf] %vm1106, %v1310
        %v1314 = vrot.slane %v593, 2
        %v1316 = vadd.f32 %v230, %v1314
        %v1317 = vlaneseq
        %v1318 = vshrl.u32 %v1317, 7
        %v1319 = vsub.s32 0, %v1318
        %v1320 = vrot.slane %v1316, %v1319
        %v1321 = vsub.f32 %v1320, %v360
        %v1322 = vsub.f32 %v1320, %v361
        %v1323 = vsub.f32 %v1320, %v362
        %v1324 = vsub.f32 %v1320, %v363
        %v1325 = vsub.f32 %v1320, %v364
        %v1326 = vsub.f32 %v1320, %v365
        %v1327 = vsub.f32 %v1320, %v366
        %v1328 = vsub.f32 %v1320, %v367
        %v1329 = vsub.f32 %v1320, %v368
        %v1330 = vsub.f32 %v1320, %v369
        %v1331 = vsub.f32 %v1320, %v370
        %v1332 = vsub.f32 %v1320, %v371
        %v1333 = vsub.f32 %v1320, %v372
        %v1334 = vsub.f32 %v1320, %v373
        %v1335 = vsub.f32 %v1320, %v374
        %v1336 = vsub.f32 %v1320, %v375
        %v1337 = vsub.f32 %v1320, %v376
        %v1338 = vsub.f32 %v1320, %v377
        %v1339 = vsub.f32 %v1320, %v378
        %v1340 = vsub.f32 %v1320, %v379
        %v1341 = vsub.f32 %v1320, %v380
        %v1342 = vsub.f32 %v1320, %v381
        %v1343 = vsub.f32 %v1320, %v382
        %v1344 = vsub.f32 %v1320, %v383
        %v1345 = vsub.f32 %v1320, %v384
        %v1346 = vsub.f32 %v1320, %v385
        %v1347 = vsub.f32 %v1320, %v386
        %v1348 = vsub.f32 %v1320, %v387
        %v1349 = vsub.f32 %v1320, %v388
        %v1350 = vsub.f32 %v1320, %v389
        %v1351 = vsub.f32 %v1320, %v390
        %v1352 = vsub.f32 %v1320, %v391
        %v1353 = vand.u32 2147483647, %v1321
        %v1354 = vand.u32 2147483647, %v1322
        %v1355 = vand.u32 2147483647, %v1323
        %v1356 = vand.u32 2147483647, %v1324
        %v1357 = vand.u32 2147483647, %v1325
        %v1358 = vand.u32 2147483647, %v1326
        %v1359 = vand.u32 2147483647, %v1327
        %v1360 = vand.u32 2147483647, %v1328
        %v1361 = vand.u32 2147483647, %v1329
        %v1362 = vand.u32 2147483647, %v1330
        %v1363 = vand.u32 2147483647, %v1331
        %v1364 = vand.u32 2147483647, %v1332
        %v1365 = vand.u32 2147483647, %v1333
        %v1366 = vand.u32 2147483647, %v1334
        %v1367 = vand.u32 2147483647, %v1335
        %v1368 = vand.u32 2147483647, %v1336
        %v1369 = vand.u32 2147483647, %v1337
        %v1370 = vand.u32 2147483647, %v1338
        %v1371 = vand.u32 2147483647, %v1339
        %v1372 = vand.u32 2147483647, %v1340
        %v1373 = vand.u32 2147483647, %v1341
        %v1374 = vand.u32 2147483647, %v1342
        %v1375 = vand.u32 2147483647, %v1343
        %v1376 = vand.u32 2147483647, %v1344
        %v1377 = vand.u32 2147483647, %v1345
        %v1378 = vand.u32 2147483647, %v1346
        %v1379 = vand.u32 2147483647, %v1347
        %v1380 = vand.u32 2147483647, %v1348
        %v1381 = vand.u32 2147483647, %v1349
        %v1382 = vand.u32 2147483647, %v1350
        %v1383 = vand.u32 2147483647, %v1351
        %v1384 = vand.u32 2147483647, %v1352
        %v1385 = vsub.f32 1.0, %v1353
        %v1386 = vsub.f32 1.0, %v1354
        %v1387 = vsub.f32 1.0, %v1355
        %v1388 = vsub.f32 1.0, %v1356
        %v1389 = vsub.f32 1.0, %v1357
        %v1390 = vsub.f32 1.0, %v1358
        %v1391 = vsub.f32 1.0, %v1359
        %v1392 = vsub.f32 1.0, %v1360
        %v1393 = vsub.f32 1.0, %v1361
        %v1394 = vsub.f32 1.0, %v1362
        %v1395 = vsub.f32 1.0, %v1363
        %v1396 = vsub.f32 1.0, %v1364
        %v1397 = vsub.f32 1.0, %v1365
        %v1398 = vsub.f32 1.0, %v1366
        %v1399 = vsub.f32 1.0, %v1367
        %v1400 = vsub.f32 1.0, %v1368
        %v1401 = vsub.f32 1.0, %v1369
        %v1402 = vsub.f32 1.0, %v1370
        %v1403 = vsub.f32 1.0, %v1371
        %v1404 = vsub.f32 1.0, %v1372
        %v1405 = vsub.f32 1.0, %v1373
        %v1406 = vsub.f32 1.0, %v1374
        %v1407 = vsub.f32 1.0, %v1375
        %v1408 = vsub.f32 1.0, %v1376
        %v1409 = vsub.f32 1.0, %v1377
        %v1410 = vsub.f32 1.0, %v1378
        %v1411 = vsub.f32 1.0, %v1379
        %v1412 = vsub.f32 1.0, %v1380
        %v1413 = vsub.f32 1.0, %v1381
        %v1414 = vsub.f32 1.0, %v1382
        %v1415 = vsub.f32 1.0, %v1383
        %v1416 = vsub.f32 1.0, %v1384
        %v1417 = vmax.f32 %v1385, 0.0
        %v1418 = vmax.f32 %v1386, 0.0
        %v1419 = vmax.f32 %v1387, 0.0
        %v1420 = vmax.f32 %v1388, 0.0
        %v1421 = vmax.f32 %v1389, 0.0
        %v1422 = vmax.f32 %v1390, 0.0
        %v1423 = vmax.f32 %v1391, 0.0
        %v1424 = vmax.f32 %v1392, 0.0
        %v1425 = vmax.f32 %v1393, 0.0
        %v1426 = vmax.f32 %v1394, 0.0
        %v1427 = vmax.f32 %v1395, 0.0
        %v1428 = vmax.f32 %v1396, 0.0
        %v1429 = vmax.f32 %v1397, 0.0
        %v1430 = vmax.f32 %v1398, 0.0
        %v1431 = vmax.f32 %v1399, 0.0
        %v1432 = vmax.f32 %v1400, 0.0
        %v1433 = vmax.f32 %v1401, 0.0
        %v1434 = vmax.f32 %v1402, 0.0
        %v1435 = vmax.f32 %v1403, 0.0
        %v1436 = vmax.f32 %v1404, 0.0
        %v1437 = vmax.f32 %v1405, 0.0
        %v1438 = vmax.f32 %v1406, 0.0
        %v1439 = vmax.f32 %v1407, 0.0
        %v1440 = vmax.f32 %v1408, 0.0
        %v1441 = vmax.f32 %v1409, 0.0
        %v1442 = vmax.f32 %v1410, 0.0
        %v1443 = vmax.f32 %v1411, 0.0
        %v1444 = vmax.f32 %v1412, 0.0
        %v1445 = vmax.f32 %v1413, 0.0
        %v1446 = vmax.f32 %v1414, 0.0
        %v1447 = vmax.f32 %v1415, 0.0
        %v1448 = vmax.f32 %v1416, 0.0
        %v1449 = vmul.f32 %v1417, %v561
        %v1450 = vmul.f32 %v1418, %v562
        %v1451 = vmul.f32 %v1419, %v563
        %v1452 = vmul.f32 %v1420, %v564
        %v1453 = vmul.f32 %v1421, %v565
        %v1454 = vmul.f32 %v1422, %v566
        %v1455 = vmul.f32 %v1423, %v567
        %v1456 = vmul.f32 %v1424, %v568
        %v1457 = vmul.f32 %v1425, %v569
        %v1458 = vmul.f32 %v1426, %v570
        %v1459 = vmul.f32 %v1427, %v571
        %v1460 = vmul.f32 %v1428, %v572
        %v1461 = vmul.f32 %v1429, %v573
        %v1462 = vmul.f32 %v1430, %v574
        %v1463 = vmul.f32 %v1431, %v575
        %v1464 = vmul.f32 %v1432, %v576
        %v1465 = vmul.f32 %v1433, %v577
        %v1466 = vmul.f32 %v1434, %v578
        %v1467 = vmul.f32 %v1435, %v579
        %v1468 = vmul.f32 %v1436, %v580
        %v1469 = vmul.f32 %v1437, %v581
        %v1470 = vmul.f32 %v1438, %v582
        %v1471 = vmul.f32 %v1439, %v583
        %v1472 = vmul.f32 %v1440, %v584
        %v1473 = vmul.f32 %v1441, %v585
        %v1474 = vmul.f32 %v1442, %v586
        %v1475 = vmul.f32 %v1443, %v587
        %v1476 = vmul.f32 %v1444, %v588
        %v1477 = vmul.f32 %v1445, %v589
        %v1478 = vmul.f32 %v1446, %v590
        %v1479 = vmul.f32 %v1447, %v591
        %v1480 = vmul.f32 %v1448, %v592
        %1481 = vmatprep.subr.mxu0 0.0
        %1482 = vmatpush1.msra.mxu0 %v1449
        %1483 = vmatprep.subr.mxu0 0.0
        %1484 = vmatpush1.msra.mxu0 %v1450
        %1485 = vmatprep.subr.mxu0 0.0
        %1486 = vmatpush1.msra.mxu0 %v1451
        %1487 = vmatprep.subr.mxu0 0.0
        %1488 = vmatpush1.msra.mxu0 %v1452
        %1489 = vmatprep.subr.mxu0 0.0
        %1490 = vmatpush1.msra.mxu0 %v1453
        %1491 = vmatprep.subr.mxu0 0.0
        %1492 = vmatpush1.msra.mxu0 %v1454
        %1493 = vmatprep.subr.mxu0 0.0
        %1494 = vmatpush1.msra.mxu0 %v1455
        %1495 = vmatprep.subr.mxu0 0.0
        %1496 = vmatpush1.msra.mxu0 %v1456
        %1497 = vmatprep.subr.mxu0 0.0
        %1498 = vmatpush1.msra.mxu0 %v1457
        %1499 = vmatprep.subr.mxu0 0.0
        %1500 = vmatpush1.msra.mxu0 %v1458
        %1501 = vmatprep.subr.mxu0 0.0
        %1502 = vmatpush1.msra.mxu0 %v1459
        %1503 = vmatprep.subr.mxu0 0.0
        %1504 = vmatpush1.msra.mxu0 %v1460
        %1505 = vmatprep.subr.mxu0 0.0
        %1506 = vmatpush1.msra.mxu0 %v1461
        %1507 = vmatprep.subr.mxu0 0.0
        %1508 = vmatpush1.msra.mxu0 %v1462
        %1509 = vmatprep.subr.mxu0 0.0
        %1510 = vmatpush1.msra.mxu0 %v1463
        %1511 = vmatprep.subr.mxu0 0.0
        %1512 = vmatpush1.msra.mxu0 %v1464
        %1513 = vmatprep.subr.mxu0 0.0
        %1514 = vmatpush1.msra.mxu0 %v1465
        %1515 = vmatprep.subr.mxu0 0.0
        %1516 = vmatpush1.msra.mxu0 %v1466
        %1517 = vmatprep.subr.mxu0 0.0
        %1518 = vmatpush1.msra.mxu0 %v1467
        %1519 = vmatprep.subr.mxu0 0.0
        %1520 = vmatpush1.msra.mxu0 %v1468
        %1521 = vmatprep.subr.mxu0 0.0
        %1522 = vmatpush1.msra.mxu0 %v1469
        %1523 = vmatprep.subr.mxu0 0.0
        %1524 = vmatpush1.msra.mxu0 %v1470
        %1525 = vmatprep.subr.mxu0 0.0
        %1526 = vmatpush1.msra.mxu0 %v1471
        %1527 = vmatprep.subr.mxu0 0.0
        %1528 = vmatpush1.msra.mxu0 %v1472
        %1529 = vmatprep.subr.mxu0 0.0
        %1530 = vmatpush1.msra.mxu0 %v1473
        %1531 = vmatprep.subr.mxu0 0.0
        %1532 = vmatpush1.msra.mxu0 %v1474
        %1533 = vmatprep.subr.mxu0 0.0
        %1534 = vmatpush1.msra.mxu0 %v1475
        %1535 = vmatprep.subr.mxu0 0.0
        %1536 = vmatpush1.msra.mxu0 %v1476
        %1537 = vmatprep.subr.mxu0 0.0
        %1538 = vmatpush1.msra.mxu0 %v1477
        %1539 = vmatprep.subr.mxu0 0.0
        %1540 = vmatpush1.msra.mxu0 %v1478
        %1541 = vmatprep.subr.mxu0 0.0
        %1542 = vmatpush1.msra.mxu0 %v1479
        %1543 = vmatprep.subr.mxu0 0.0
        %1544 = vmatpush1.msra.mxu0 %v1480
        %1545 = vmatprep.mubr.f32.mxu0 %v1034
        %1546 = vmatmul.mubr.f32.gmra.mrb[0].mxu0 %v229
        %v1547 = vpop.f32.mrb[0].mxu0
        %v1548 = vadd.f32 0.0, %v1547
        %v1549 = vpop.f32.mrb[0].mxu0
        %1550 = vdwg.mxu0
        %1551 = vst.msk [vmem:[#allocation2 + $0xc] sm:$0xf] %vm1106, %v1548
        %v1552 = vmul.f32 %v1417, %v698
        %v1553 = vmul.f32 %v1418, %v699
        %v1554 = vmul.f32 %v1419, %v700
        %v1555 = vmul.f32 %v1420, %v701
        %v1556 = vmul.f32 %v1421, %v702
        %v1557 = vmul.f32 %v1422, %v703
        %v1558 = vmul.f32 %v1423, %v704
        %v1559 = vmul.f32 %v1424, %v705
        %v1560 = vmul.f32 %v1425, %v706
        %v1561 = vmul.f32 %v1426, %v707
        %v1562 = vmul.f32 %v1427, %v708
        %v1563 = vmul.f32 %v1428, %v709
        %v1564 = vmul.f32 %v1429, %v710
        %v1565 = vmul.f32 %v1430, %v711
        %v1566 = vmul.f32 %v1431, %v712
        %v1567 = vmul.f32 %v1432, %v713
        %v1568 = vmul.f32 %v1433, %v714
        %v1569 = vmul.f32 %v1434, %v715
        %v1570 = vmul.f32 %v1435, %v716
        %v1571 = vmul.f32 %v1436, %v717
        %v1572 = vmul.f32 %v1437, %v718
        %v1573 = vmul.f32 %v1438, %v719
        %v1574 = vmul.f32 %v1439, %v720
        %v1575 = vmul.f32 %v1440, %v721
        %v1576 = vmul.f32 %v1441, %v722
        %v1577 = vmul.f32 %v1442, %v723
        %v1578 = vmul.f32 %v1443, %v724
        %v1579 = vmul.f32 %v1444, %v725
        %v1580 = vmul.f32 %v1445, %v726
        %v1581 = vmul.f32 %v1446, %v727
        %v1582 = vmul.f32 %v1447, %v728
        %v1583 = vmul.f32 %v1448, %v729
        %1584 = vmatprep.subr.mxu0 0.0
        %1585 = vmatpush1.msra.mxu0 %v1552
        %1586 = vmatprep.subr.mxu0 0.0
        %1587 = vmatpush1.msra.mxu0 %v1553
        %1588 = vmatprep.subr.mxu0 0.0
        %1589 = vmatpush1.msra.mxu0 %v1554
        %1590 = vmatprep.subr.mxu0 0.0
        %1591 = vmatpush1.msra.mxu0 %v1555
        %1592 = vmatprep.subr.mxu0 0.0
        %1593 = vmatpush1.msra.mxu0 %v1556
        %1594 = vmatprep.subr.mxu0 0.0
        %1595 = vmatpush1.msra.mxu0 %v1557
        %1596 = vmatprep.subr.mxu0 0.0
        %1597 = vmatpush1.msra.mxu0 %v1558
        %1598 = vmatprep.subr.mxu0 0.0
        %1599 = vmatpush1.msra.mxu0 %v1559
        %1600 = vmatprep.subr.mxu0 0.0
        %1601 = vmatpush1.msra.mxu0 %v1560
        %1602 = vmatprep.subr.mxu0 0.0
        %1603 = vmatpush1.msra.mxu0 %v1561
        %1604 = vmatprep.subr.mxu0 0.0
        %1605 = vmatpush1.msra.mxu0 %v1562
        %1606 = vmatprep.subr.mxu0 0.0
        %1607 = vmatpush1.msra.mxu0 %v1563
        %1608 = vmatprep.subr.mxu0 0.0
        %1609 = vmatpush1.msra.mxu0 %v1564
        %1610 = vmatprep.subr.mxu0 0.0
        %1611 = vmatpush1.msra.mxu0 %v1565
        %1612 = vmatprep.subr.mxu0 0.0
        %1613 = vmatpush1.msra.mxu0 %v1566
        %1614 = vmatprep.subr.mxu0 0.0
        %1615 = vmatpush1.msra.mxu0 %v1567
        %1616 = vmatprep.subr.mxu0 0.0
        %1617 = vmatpush1.msra.mxu0 %v1568
        %1618 = vmatprep.subr.mxu0 0.0
        %1619 = vmatpush1.msra.mxu0 %v1569
        %1620 = vmatprep.subr.mxu0 0.0
        %1621 = vmatpush1.msra.mxu0 %v1570
        %1622 = vmatprep.subr.mxu0 0.0
        %1623 = vmatpush1.msra.mxu0 %v1571
        %1624 = vmatprep.subr.mxu0 0.0
        %1625 = vmatpush1.msra.mxu0 %v1572
        %1626 = vmatprep.subr.mxu0 0.0
        %1627 = vmatpush1.msra.mxu0 %v1573
        %1628 = vmatprep.subr.mxu0 0.0
        %1629 = vmatpush1.msra.mxu0 %v1574
        %1630 = vmatprep.subr.mxu0 0.0
        %1631 = vmatpush1.msra.mxu0 %v1575
        %1632 = vmatprep.subr.mxu0 0.0
        %1633 = vmatpush1.msra.mxu0 %v1576
        %1634 = vmatprep.subr.mxu0 0.0
        %1635 = vmatpush1.msra.mxu0 %v1577
        %1636 = vmatprep.subr.mxu0 0.0
        %1637 = vmatpush1.msra.mxu0 %v1578
        %1638 = vmatprep.subr.mxu0 0.0
        %1639 = vmatpush1.msra.mxu0 %v1579
        %1640 = vmatprep.subr.mxu0 0.0
        %1641 = vmatpush1.msra.mxu0 %v1580
        %1642 = vmatprep.subr.mxu0 0.0
        %1643 = vmatpush1.msra.mxu0 %v1581
        %1644 = vmatprep.subr.mxu0 0.0
        %1645 = vmatpush1.msra.mxu0 %v1582
        %1646 = vmatprep.subr.mxu0 0.0
        %1647 = vmatpush1.msra.mxu0 %v1583
        %1648 = vmatprep.mubr.f32.mxu0 %v1034
        %1649 = vmatmul.mubr.f32.gmra.mrb[0].mxu0 %v229
        %v1650 = vpop.f32.mrb[0].mxu0
        %v1651 = vadd.f32 0.0, %v1650
        %v1652 = vpop.f32.mrb[0].mxu0
        %1653 = vdwg.mxu0
        %1654 = vst.msk [vmem:[#allocation2 + $0x10] sm:$0xf] %vm1106, %v1651
        %v1655 = vmul.f32 %v1417, %v834
        %v1656 = vmul.f32 %v1418, %v835
        %v1657 = vmul.f32 %v1419, %v836
        %v1658 = vmul.f32 %v1420, %v837
        %v1659 = vmul.f32 %v1421, %v838
        %v1660 = vmul.f32 %v1422, %v839
        %v1661 = vmul.f32 %v1423, %v840
        %v1662 = vmul.f32 %v1424, %v841
        %v1663 = vmul.f32 %v1425, %v842
        %v1664 = vmul.f32 %v1426, %v843
        %v1665 = vmul.f32 %v1427, %v844
        %v1666 = vmul.f32 %v1428, %v845
        %v1667 = vmul.f32 %v1429, %v846
        %v1668 = vmul.f32 %v1430, %v847
        %v1669 = vmul.f32 %v1431, %v848
        %v1670 = vmul.f32 %v1432, %v849
        %v1671 = vmul.f32 %v1433, %v850
        %v1672 = vmul.f32 %v1434, %v851
        %v1673 = vmul.f32 %v1435, %v852
        %v1674 = vmul.f32 %v1436, %v853
        %v1675 = vmul.f32 %v1437, %v854
        %v1676 = vmul.f32 %v1438, %v855
        %v1677 = vmul.f32 %v1439, %v856
        %v1678 = vmul.f32 %v1440, %v857
        %v1679 = vmul.f32 %v1441, %v858
        %v1680 = vmul.f32 %v1442, %v859
        %v1681 = vmul.f32 %v1443, %v860
        %v1682 = vmul.f32 %v1444, %v861
        %v1683 = vmul.f32 %v1445, %v862
        %v1684 = vmul.f32 %v1446, %v863
        %v1685 = vmul.f32 %v1447, %v864
        %v1686 = vmul.f32 %v1448, %v865
        %1687 = vmatprep.subr.mxu0 0.0
        %1688 = vmatpush1.msra.mxu0 %v1655
        %1689 = vmatprep.subr.mxu0 0.0
        %1690 = vmatpush1.msra.mxu0 %v1656
        %1691 = vmatprep.subr.mxu0 0.0
        %1692 = vmatpush1.msra.mxu0 %v1657
        %1693 = vmatprep.subr.mxu0 0.0
        %1694 = vmatpush1.msra.mxu0 %v1658
        %1695 = vmatprep.subr.mxu0 0.0
        %1696 = vmatpush1.msra.mxu0 %v1659
        %1697 = vmatprep.subr.mxu0 0.0
        %1698 = vmatpush1.msra.mxu0 %v1660
        %1699 = vmatprep.subr.mxu0 0.0
        %1700 = vmatpush1.msra.mxu0 %v1661
        %1701 = vmatprep.subr.mxu0 0.0
        %1702 = vmatpush1.msra.mxu0 %v1662
        %1703 = vmatprep.subr.mxu0 0.0
        %1704 = vmatpush1.msra.mxu0 %v1663
        %1705 = vmatprep.subr.mxu0 0.0
        %1706 = vmatpush1.msra.mxu0 %v1664
        %1707 = vmatprep.subr.mxu0 0.0
        %1708 = vmatpush1.msra.mxu0 %v1665
        %1709 = vmatprep.subr.mxu0 0.0
        %1710 = vmatpush1.msra.mxu0 %v1666
        %1711 = vmatprep.subr.mxu0 0.0
        %1712 = vmatpush1.msra.mxu0 %v1667
        %1713 = vmatprep.subr.mxu0 0.0
        %1714 = vmatpush1.msra.mxu0 %v1668
        %1715 = vmatprep.subr.mxu0 0.0
        %1716 = vmatpush1.msra.mxu0 %v1669
        %1717 = vmatprep.subr.mxu0 0.0
        %1718 = vmatpush1.msra.mxu0 %v1670
        %1719 = vmatprep.subr.mxu0 0.0
        %1720 = vmatpush1.msra.mxu0 %v1671
        %1721 = vmatprep.subr.mxu0 0.0
        %1722 = vmatpush1.msra.mxu0 %v1672
        %1723 = vmatprep.subr.mxu0 0.0
        %1724 = vmatpush1.msra.mxu0 %v1673
        %1725 = vmatprep.subr.mxu0 0.0
        %1726 = vmatpush1.msra.mxu0 %v1674
        %1727 = vmatprep.subr.mxu0 0.0
        %1728 = vmatpush1.msra.mxu0 %v1675
        %1729 = vmatprep.subr.mxu0 0.0
        %1730 = vmatpush1.msra.mxu0 %v1676
        %1731 = vmatprep.subr.mxu0 0.0
        %1732 = vmatpush1.msra.mxu0 %v1677
        %1733 = vmatprep.subr.mxu0 0.0
        %1734 = vmatpush1.msra.mxu0 %v1678
        %1735 = vmatprep.subr.mxu0 0.0
        %1736 = vmatpush1.msra.mxu0 %v1679
        %1737 = vmatprep.subr.mxu0 0.0
        %1738 = vmatpush1.msra.mxu0 %v1680
        %1739 = vmatprep.subr.mxu0 0.0
        %1740 = vmatpush1.msra.mxu0 %v1681
        %1741 = vmatprep.subr.mxu0 0.0
        %1742 = vmatpush1.msra.mxu0 %v1682
        %1743 = vmatprep.subr.mxu0 0.0
        %1744 = vmatpush1.msra.mxu0 %v1683
        %1745 = vmatprep.subr.mxu0 0.0
        %1746 = vmatpush1.msra.mxu0 %v1684
        %1747 = vmatprep.subr.mxu0 0.0
        %1748 = vmatpush1.msra.mxu0 %v1685
        %1749 = vmatprep.subr.mxu0 0.0
        %1750 = vmatpush1.msra.mxu0 %v1686
        %1751 = vmatprep.mubr.f32.mxu0 %v1034
        %1752 = vmatmul.mubr.f32.gmra.mrb[0].mxu0 %v229
        %v1753 = vpop.f32.mrb[0].mxu0
        %v1754 = vadd.f32 0.0, %v1753
        %v1755 = vpop.f32.mrb[0].mxu0
        %1756 = vdwg.mxu0
        %1757 = vst.msk [vmem:[#allocation2 + $0x14] sm:$0xf] %vm1106, %v1754
        %v1758 = vrot.slane %v230, 2
        %v1760 = vadd.f32 %v230, %v1758
        %v1761 = vlaneseq
        %v1762 = vshrl.u32 %v1761, 7
        %v1763 = vsub.s32 0, %v1762
        %v1764 = vrot.slane %v1760, %v1763
        %v1765 = vsub.f32 %v1764, %v360
        %v1766 = vsub.f32 %v1764, %v361
        %v1767 = vsub.f32 %v1764, %v362
        %v1768 = vsub.f32 %v1764, %v363
        %v1769 = vsub.f32 %v1764, %v364
        %v1770 = vsub.f32 %v1764, %v365
        %v1771 = vsub.f32 %v1764, %v366
        %v1772 = vsub.f32 %v1764, %v367
        %v1773 = vsub.f32 %v1764, %v368
        %v1774 = vsub.f32 %v1764, %v369
        %v1775 = vsub.f32 %v1764, %v370
        %v1776 = vsub.f32 %v1764, %v371
        %v1777 = vsub.f32 %v1764, %v372
        %v1778 = vsub.f32 %v1764, %v373
        %v1779 = vsub.f32 %v1764, %v374
        %v1780 = vsub.f32 %v1764, %v375
        %v1781 = vsub.f32 %v1764, %v376
        %v1782 = vsub.f32 %v1764, %v377
        %v1783 = vsub.f32 %v1764, %v378
        %v1784 = vsub.f32 %v1764, %v379
        %v1785 = vsub.f32 %v1764, %v380
        %v1786 = vsub.f32 %v1764, %v381
        %v1787 = vsub.f32 %v1764, %v382
        %v1788 = vsub.f32 %v1764, %v383
        %v1789 = vsub.f32 %v1764, %v384
        %v1790 = vsub.f32 %v1764, %v385
        %v1791 = vsub.f32 %v1764, %v386
        %v1792 = vsub.f32 %v1764, %v387
        %v1793 = vsub.f32 %v1764, %v388
        %v1794 = vsub.f32 %v1764, %v389
        %v1795 = vsub.f32 %v1764, %v390
        %v1796 = vsub.f32 %v1764, %v391
        %v1797 = vand.u32 2147483647, %v1765
        %v1798 = vand.u32 2147483647, %v1766
        %v1799 = vand.u32 2147483647, %v1767
        %v1800 = vand.u32 2147483647, %v1768
        %v1801 = vand.u32 2147483647, %v1769
        %v1802 = vand.u32 2147483647, %v1770
        %v1803 = vand.u32 2147483647, %v1771
        %v1804 = vand.u32 2147483647, %v1772
        %v1805 = vand.u32 2147483647, %v1773
        %v1806 = vand.u32 2147483647, %v1774
        %v1807 = vand.u32 2147483647, %v1775
        %v1808 = vand.u32 2147483647, %v1776
        %v1809 = vand.u32 2147483647, %v1777
        %v1810 = vand.u32 2147483647, %v1778
        %v1811 = vand.u32 2147483647, %v1779
        %v1812 = vand.u32 2147483647, %v1780
        %v1813 = vand.u32 2147483647, %v1781
        %v1814 = vand.u32 2147483647, %v1782
        %v1815 = vand.u32 2147483647, %v1783
        %v1816 = vand.u32 2147483647, %v1784
        %v1817 = vand.u32 2147483647, %v1785
        %v1818 = vand.u32 2147483647, %v1786
        %v1819 = vand.u32 2147483647, %v1787
        %v1820 = vand.u32 2147483647, %v1788
        %v1821 = vand.u32 2147483647, %v1789
        %v1822 = vand.u32 2147483647, %v1790
        %v1823 = vand.u32 2147483647, %v1791
        %v1824 = vand.u32 2147483647, %v1792
        %v1825 = vand.u32 2147483647, %v1793
        %v1826 = vand.u32 2147483647, %v1794
        %v1827 = vand.u32 2147483647, %v1795
        %v1828 = vand.u32 2147483647, %v1796
        %v1829 = vsub.f32 1.0, %v1797
        %v1830 = vsub.f32 1.0, %v1798
        %v1831 = vsub.f32 1.0, %v1799
        %v1832 = vsub.f32 1.0, %v1800
        %v1833 = vsub.f32 1.0, %v1801
        %v1834 = vsub.f32 1.0, %v1802
        %v1835 = vsub.f32 1.0, %v1803
        %v1836 = vsub.f32 1.0, %v1804
        %v1837 = vsub.f32 1.0, %v1805
        %v1838 = vsub.f32 1.0, %v1806
        %v1839 = vsub.f32 1.0, %v1807
        %v1840 = vsub.f32 1.0, %v1808
        %v1841 = vsub.f32 1.0, %v1809
        %v1842 = vsub.f32 1.0, %v1810
        %v1843 = vsub.f32 1.0, %v1811
        %v1844 = vsub.f32 1.0, %v1812
        %v1845 = vsub.f32 1.0, %v1813
        %v1846 = vsub.f32 1.0, %v1814
        %v1847 = vsub.f32 1.0, %v1815
        %v1848 = vsub.f32 1.0, %v1816
        %v1849 = vsub.f32 1.0, %v1817
        %v1850 = vsub.f32 1.0, %v1818
        %v1851 = vsub.f32 1.0, %v1819
        %v1852 = vsub.f32 1.0, %v1820
        %v1853 = vsub.f32 1.0, %v1821
        %v1854 = vsub.f32 1.0, %v1822
        %v1855 = vsub.f32 1.0, %v1823
        %v1856 = vsub.f32 1.0, %v1824
        %v1857 = vsub.f32 1.0, %v1825
        %v1858 = vsub.f32 1.0, %v1826
        %v1859 = vsub.f32 1.0, %v1827
        %v1860 = vsub.f32 1.0, %v1828
        %v1861 = vmax.f32 %v1829, 0.0
        %v1862 = vmax.f32 %v1830, 0.0
        %v1863 = vmax.f32 %v1831, 0.0
        %v1864 = vmax.f32 %v1832, 0.0
        %v1865 = vmax.f32 %v1833, 0.0
        %v1866 = vmax.f32 %v1834, 0.0
        %v1867 = vmax.f32 %v1835, 0.0
        %v1868 = vmax.f32 %v1836, 0.0
        %v1869 = vmax.f32 %v1837, 0.0
        %v1870 = vmax.f32 %v1838, 0.0
        %v1871 = vmax.f32 %v1839, 0.0
        %v1872 = vmax.f32 %v1840, 0.0
        %v1873 = vmax.f32 %v1841, 0.0
        %v1874 = vmax.f32 %v1842, 0.0
        %v1875 = vmax.f32 %v1843, 0.0
        %v1876 = vmax.f32 %v1844, 0.0
        %v1877 = vmax.f32 %v1845, 0.0
        %v1878 = vmax.f32 %v1846, 0.0
        %v1879 = vmax.f32 %v1847, 0.0
        %v1880 = vmax.f32 %v1848, 0.0
        %v1881 = vmax.f32 %v1849, 0.0
        %v1882 = vmax.f32 %v1850, 0.0
        %v1883 = vmax.f32 %v1851, 0.0
        %v1884 = vmax.f32 %v1852, 0.0
        %v1885 = vmax.f32 %v1853, 0.0
        %v1886 = vmax.f32 %v1854, 0.0
        %v1887 = vmax.f32 %v1855, 0.0
        %v1888 = vmax.f32 %v1856, 0.0
        %v1889 = vmax.f32 %v1857, 0.0
        %v1890 = vmax.f32 %v1858, 0.0
        %v1891 = vmax.f32 %v1859, 0.0
        %v1892 = vmax.f32 %v1860, 0.0
        %v1893 = vmul.f32 %v1861, %v561
        %v1894 = vmul.f32 %v1862, %v562
        %v1895 = vmul.f32 %v1863, %v563
        %v1896 = vmul.f32 %v1864, %v564
        %v1897 = vmul.f32 %v1865, %v565
        %v1898 = vmul.f32 %v1866, %v566
        %v1899 = vmul.f32 %v1867, %v567
        %v1900 = vmul.f32 %v1868, %v568
        %v1901 = vmul.f32 %v1869, %v569
        %v1902 = vmul.f32 %v1870, %v570
        %v1903 = vmul.f32 %v1871, %v571
        %v1904 = vmul.f32 %v1872, %v572
        %v1905 = vmul.f32 %v1873, %v573
        %v1906 = vmul.f32 %v1874, %v574
        %v1907 = vmul.f32 %v1875, %v575
        %v1908 = vmul.f32 %v1876, %v576
        %v1909 = vmul.f32 %v1877, %v577
        %v1910 = vmul.f32 %v1878, %v578
        %v1911 = vmul.f32 %v1879, %v579
        %v1912 = vmul.f32 %v1880, %v580
        %v1913 = vmul.f32 %v1881, %v581
        %v1914 = vmul.f32 %v1882, %v582
        %v1915 = vmul.f32 %v1883, %v583
        %v1916 = vmul.f32 %v1884, %v584
        %v1917 = vmul.f32 %v1885, %v585
        %v1918 = vmul.f32 %v1886, %v586
        %v1919 = vmul.f32 %v1887, %v587
        %v1920 = vmul.f32 %v1888, %v588
        %v1921 = vmul.f32 %v1889, %v589
        %v1922 = vmul.f32 %v1890, %v590
        %v1923 = vmul.f32 %v1891, %v591
        %v1924 = vmul.f32 %v1892, %v592
        %1925 = vmatprep.subr.mxu0 0.0
        %1926 = vmatpush1.msra.mxu0 %v1893
        %1927 = vmatprep.subr.mxu0 0.0
        %1928 = vmatpush1.msra.mxu0 %v1894
        %1929 = vmatprep.subr.mxu0 0.0
        %1930 = vmatpush1.msra.mxu0 %v1895
        %1931 = vmatprep.subr.mxu0 0.0
        %1932 = vmatpush1.msra.mxu0 %v1896
        %1933 = vmatprep.subr.mxu0 0.0
        %1934 = vmatpush1.msra.mxu0 %v1897
        %1935 = vmatprep.subr.mxu0 0.0
        %1936 = vmatpush1.msra.mxu0 %v1898
        %1937 = vmatprep.subr.mxu0 0.0
        %1938 = vmatpush1.msra.mxu0 %v1899
        %1939 = vmatprep.subr.mxu0 0.0
        %1940 = vmatpush1.msra.mxu0 %v1900
        %1941 = vmatprep.subr.mxu0 0.0
        %1942 = vmatpush1.msra.mxu0 %v1901
        %1943 = vmatprep.subr.mxu0 0.0
        %1944 = vmatpush1.msra.mxu0 %v1902
        %1945 = vmatprep.subr.mxu0 0.0
        %1946 = vmatpush1.msra.mxu0 %v1903
        %1947 = vmatprep.subr.mxu0 0.0
        %1948 = vmatpush1.msra.mxu0 %v1904
        %1949 = vmatprep.subr.mxu0 0.0
        %1950 = vmatpush1.msra.mxu0 %v1905
        %1951 = vmatprep.subr.mxu0 0.0
        %1952 = vmatpush1.msra.mxu0 %v1906
        %1953 = vmatprep.subr.mxu0 0.0
        %1954 = vmatpush1.msra.mxu0 %v1907
        %1955 = vmatprep.subr.mxu0 0.0
        %1956 = vmatpush1.msra.mxu0 %v1908
        %1957 = vmatprep.subr.mxu0 0.0
        %1958 = vmatpush1.msra.mxu0 %v1909
        %1959 = vmatprep.subr.mxu0 0.0
        %1960 = vmatpush1.msra.mxu0 %v1910
        %1961 = vmatprep.subr.mxu0 0.0
        %1962 = vmatpush1.msra.mxu0 %v1911
        %1963 = vmatprep.subr.mxu0 0.0
        %1964 = vmatpush1.msra.mxu0 %v1912
        %1965 = vmatprep.subr.mxu0 0.0
        %1966 = vmatpush1.msra.mxu0 %v1913
        %1967 = vmatprep.subr.mxu0 0.0
        %1968 = vmatpush1.msra.mxu0 %v1914
        %1969 = vmatprep.subr.mxu0 0.0
        %1970 = vmatpush1.msra.mxu0 %v1915
        %1971 = vmatprep.subr.mxu0 0.0
        %1972 = vmatpush1.msra.mxu0 %v1916
        %1973 = vmatprep.subr.mxu0 0.0
        %1974 = vmatpush1.msra.mxu0 %v1917
        %1975 = vmatprep.subr.mxu0 0.0
        %1976 = vmatpush1.msra.mxu0 %v1918
        %1977 = vmatprep.subr.mxu0 0.0
        %1978 = vmatpush1.msra.mxu0 %v1919
        %1979 = vmatprep.subr.mxu0 0.0
        %1980 = vmatpush1.msra.mxu0 %v1920
        %1981 = vmatprep.subr.mxu0 0.0
        %1982 = vmatpush1.msra.mxu0 %v1921
        %1983 = vmatprep.subr.mxu0 0.0
        %1984 = vmatpush1.msra.mxu0 %v1922
        %1985 = vmatprep.subr.mxu0 0.0
        %1986 = vmatpush1.msra.mxu0 %v1923
        %1987 = vmatprep.subr.mxu0 0.0
        %1988 = vmatpush1.msra.mxu0 %v1924
        %1989 = vmatprep.mubr.f32.mxu0 %v1034
        %1990 = vmatmul.mubr.f32.gmra.mrb[0].mxu0 %v229
        %v1991 = vpop.f32.mrb[0].mxu0
        %v1992 = vadd.f32 0.0, %v1991
        %v1993 = vpop.f32.mrb[0].mxu0
        %1994 = vdwg.mxu0
        %1995 = vst.msk [vmem:[#allocation2 + $0x18] sm:$0xf] %vm1106, %v1992
        %v1996 = vmul.f32 %v1861, %v698
        %v1997 = vmul.f32 %v1862, %v699
        %v1998 = vmul.f32 %v1863, %v700
        %v1999 = vmul.f32 %v1864, %v701
        %v2000 = vmul.f32 %v1865, %v702
        %v2001 = vmul.f32 %v1866, %v703
        %v2002 = vmul.f32 %v1867, %v704
        %v2003 = vmul.f32 %v1868, %v705
        %v2004 = vmul.f32 %v1869, %v706
        %v2005 = vmul.f32 %v1870, %v707
        %v2006 = vmul.f32 %v1871, %v708
        %v2007 = vmul.f32 %v1872, %v709
        %v2008 = vmul.f32 %v1873, %v710
        %v2009 = vmul.f32 %v1874, %v711
        %v2010 = vmul.f32 %v1875, %v712
        %v2011 = vmul.f32 %v1876, %v713
        %v2012 = vmul.f32 %v1877, %v714
        %v2013 = vmul.f32 %v1878, %v715
        %v2014 = vmul.f32 %v1879, %v716
        %v2015 = vmul.f32 %v1880, %v717
        %v2016 = vmul.f32 %v1881, %v718
        %v2017 = vmul.f32 %v1882, %v719
        %v2018 = vmul.f32 %v1883, %v720
        %v2019 = vmul.f32 %v1884, %v721
        %v2020 = vmul.f32 %v1885, %v722
        %v2021 = vmul.f32 %v1886, %v723
        %v2022 = vmul.f32 %v1887, %v724
        %v2023 = vmul.f32 %v1888, %v725
        %v2024 = vmul.f32 %v1889, %v726
        %v2025 = vmul.f32 %v1890, %v727
        %v2026 = vmul.f32 %v1891, %v728
        %v2027 = vmul.f32 %v1892, %v729
        %2028 = vmatprep.subr.mxu0 0.0
        %2029 = vmatpush1.msra.mxu0 %v1996
        %2030 = vmatprep.subr.mxu0 0.0
        %2031 = vmatpush1.msra.mxu0 %v1997
        %2032 = vmatprep.subr.mxu0 0.0
        %2033 = vmatpush1.msra.mxu0 %v1998
        %2034 = vmatprep.subr.mxu0 0.0
        %2035 = vmatpush1.msra.mxu0 %v1999
        %2036 = vmatprep.subr.mxu0 0.0
        %2037 = vmatpush1.msra.mxu0 %v2000
        %2038 = vmatprep.subr.mxu0 0.0
        %2039 = vmatpush1.msra.mxu0 %v2001
        %2040 = vmatprep.subr.mxu0 0.0
        %2041 = vmatpush1.msra.mxu0 %v2002
        %2042 = vmatprep.subr.mxu0 0.0
        %2043 = vmatpush1.msra.mxu0 %v2003
        %2044 = vmatprep.subr.mxu0 0.0
        %2045 = vmatpush1.msra.mxu0 %v2004
        %2046 = vmatprep.subr.mxu0 0.0
        %2047 = vmatpush1.msra.mxu0 %v2005
        %2048 = vmatprep.subr.mxu0 0.0
        %2049 = vmatpush1.msra.mxu0 %v2006
        %2050 = vmatprep.subr.mxu0 0.0
        %2051 = vmatpush1.msra.mxu0 %v2007
        %2052 = vmatprep.subr.mxu0 0.0
        %2053 = vmatpush1.msra.mxu0 %v2008
        %2054 = vmatprep.subr.mxu0 0.0
        %2055 = vmatpush1.msra.mxu0 %v2009
        %2056 = vmatprep.subr.mxu0 0.0
        %2057 = vmatpush1.msra.mxu0 %v2010
        %2058 = vmatprep.subr.mxu0 0.0
        %2059 = vmatpush1.msra.mxu0 %v2011
        %2060 = vmatprep.subr.mxu0 0.0
        %2061 = vmatpush1.msra.mxu0 %v2012
        %2062 = vmatprep.subr.mxu0 0.0
        %2063 = vmatpush1.msra.mxu0 %v2013
        %2064 = vmatprep.subr.mxu0 0.0
        %2065 = vmatpush1.msra.mxu0 %v2014
        %2066 = vmatprep.subr.mxu0 0.0
        %2067 = vmatpush1.msra.mxu0 %v2015
        %2068 = vmatprep.subr.mxu0 0.0
        %2069 = vmatpush1.msra.mxu0 %v2016
        %2070 = vmatprep.subr.mxu0 0.0
        %2071 = vmatpush1.msra.mxu0 %v2017
        %2072 = vmatprep.subr.mxu0 0.0
        %2073 = vmatpush1.msra.mxu0 %v2018
        %2074 = vmatprep.subr.mxu0 0.0
        %2075 = vmatpush1.msra.mxu0 %v2019
        %2076 = vmatprep.subr.mxu0 0.0
        %2077 = vmatpush1.msra.mxu0 %v2020
        %2078 = vmatprep.subr.mxu0 0.0
        %2079 = vmatpush1.msra.mxu0 %v2021
        %2080 = vmatprep.subr.mxu0 0.0
        %2081 = vmatpush1.msra.mxu0 %v2022
        %2082 = vmatprep.subr.mxu0 0.0
        %2083 = vmatpush1.msra.mxu0 %v2023
        %2084 = vmatprep.subr.mxu0 0.0
        %2085 = vmatpush1.msra.mxu0 %v2024
        %2086 = vmatprep.subr.mxu0 0.0
        %2087 = vmatpush1.msra.mxu0 %v2025
        %2088 = vmatprep.subr.mxu0 0.0
        %2089 = vmatpush1.msra.mxu0 %v2026
        %2090 = vmatprep.subr.mxu0 0.0
        %2091 = vmatpush1.msra.mxu0 %v2027
        %2092 = vmatprep.mubr.f32.mxu0 %v1034
        %2093 = vmatmul.mubr.f32.gmra.mrb[0].mxu0 %v229
        %v2094 = vpop.f32.mrb[0].mxu0
        %v2095 = vadd.f32 0.0, %v2094
        %v2096 = vpop.f32.mrb[0].mxu0
        %2097 = vdwg.mxu0
        %2098 = vst.msk [vmem:[#allocation2 + $0x1c] sm:$0xf] %vm1106, %v2095
        %v2099 = vmul.f32 %v1861, %v834
        %v2100 = vmul.f32 %v1862, %v835
        %v2101 = vmul.f32 %v1863, %v836
        %v2102 = vmul.f32 %v1864, %v837
        %v2103 = vmul.f32 %v1865, %v838
        %v2104 = vmul.f32 %v1866, %v839
        %v2105 = vmul.f32 %v1867, %v840
        %v2106 = vmul.f32 %v1868, %v841
        %v2107 = vmul.f32 %v1869, %v842
        %v2108 = vmul.f32 %v1870, %v843
        %v2109 = vmul.f32 %v1871, %v844
        %v2110 = vmul.f32 %v1872, %v845
        %v2111 = vmul.f32 %v1873, %v846
        %v2112 = vmul.f32 %v1874, %v847
        %v2113 = vmul.f32 %v1875, %v848
        %v2114 = vmul.f32 %v1876, %v849
        %v2115 = vmul.f32 %v1877, %v850
        %v2116 = vmul.f32 %v1878, %v851
        %v2117 = vmul.f32 %v1879, %v852
        %v2118 = vmul.f32 %v1880, %v853
        %v2119 = vmul.f32 %v1881, %v854
        %v2120 = vmul.f32 %v1882, %v855
        %v2121 = vmul.f32 %v1883, %v856
        %v2122 = vmul.f32 %v1884, %v857
        %v2123 = vmul.f32 %v1885, %v858
        %v2124 = vmul.f32 %v1886, %v859
        %v2125 = vmul.f32 %v1887, %v860
        %v2126 = vmul.f32 %v1888, %v861
        %v2127 = vmul.f32 %v1889, %v862
        %v2128 = vmul.f32 %v1890, %v863
        %v2129 = vmul.f32 %v1891, %v864
        %v2130 = vmul.f32 %v1892, %v865
        %2131 = vmatprep.subr.mxu0 0.0
        %2132 = vmatpush1.msra.mxu0 %v2099
        %2133 = vmatprep.subr.mxu0 0.0
        %2134 = vmatpush1.msra.mxu0 %v2100
        %2135 = vmatprep.subr.mxu0 0.0
        %2136 = vmatpush1.msra.mxu0 %v2101
        %2137 = vmatprep.subr.mxu0 0.0
        %2138 = vmatpush1.msra.mxu0 %v2102
        %2139 = vmatprep.subr.mxu0 0.0
        %2140 = vmatpush1.msra.mxu0 %v2103
        %2141 = vmatprep.subr.mxu0 0.0
        %2142 = vmatpush1.msra.mxu0 %v2104
        %2143 = vmatprep.subr.mxu0 0.0
        %2144 = vmatpush1.msra.mxu0 %v2105
        %2145 = vmatprep.subr.mxu0 0.0
        %2146 = vmatpush1.msra.mxu0 %v2106
        %2147 = vmatprep.subr.mxu0 0.0
        %2148 = vmatpush1.msra.mxu0 %v2107
        %2149 = vmatprep.subr.mxu0 0.0
        %2150 = vmatpush1.msra.mxu0 %v2108
        %2151 = vmatprep.subr.mxu0 0.0
        %2152 = vmatpush1.msra.mxu0 %v2109
        %2153 = vmatprep.subr.mxu0 0.0
        %2154 = vmatpush1.msra.mxu0 %v2110
        %2155 = vmatprep.subr.mxu0 0.0
        %2156 = vmatpush1.msra.mxu0 %v2111
        %2157 = vmatprep.subr.mxu0 0.0
        %2158 = vmatpush1.msra.mxu0 %v2112
        %2159 = vmatprep.subr.mxu0 0.0
        %2160 = vmatpush1.msra.mxu0 %v2113
        %2161 = vmatprep.subr.mxu0 0.0
        %2162 = vmatpush1.msra.mxu0 %v2114
        %2163 = vmatprep.subr.mxu0 0.0
        %2164 = vmatpush1.msra.mxu0 %v2115
        %2165 = vmatprep.subr.mxu0 0.0
        %2166 = vmatpush1.msra.mxu0 %v2116
        %2167 = vmatprep.subr.mxu0 0.0
        %2168 = vmatpush1.msra.mxu0 %v2117
        %2169 = vmatprep.subr.mxu0 0.0
        %2170 = vmatpush1.msra.mxu0 %v2118
        %2171 = vmatprep.subr.mxu0 0.0
        %2172 = vmatpush1.msra.mxu0 %v2119
        %2173 = vmatprep.subr.mxu0 0.0
        %2174 = vmatpush1.msra.mxu0 %v2120
        %2175 = vmatprep.subr.mxu0 0.0
        %2176 = vmatpush1.msra.mxu0 %v2121
        %2177 = vmatprep.subr.mxu0 0.0
        %2178 = vmatpush1.msra.mxu0 %v2122
        %2179 = vmatprep.subr.mxu0 0.0
        %2180 = vmatpush1.msra.mxu0 %v2123
        %2181 = vmatprep.subr.mxu0 0.0
        %2182 = vmatpush1.msra.mxu0 %v2124
        %2183 = vmatprep.subr.mxu0 0.0
        %2184 = vmatpush1.msra.mxu0 %v2125
        %2185 = vmatprep.subr.mxu0 0.0
        %2186 = vmatpush1.msra.mxu0 %v2126
        %2187 = vmatprep.subr.mxu0 0.0
        %2188 = vmatpush1.msra.mxu0 %v2127
        %2189 = vmatprep.subr.mxu0 0.0
        %2190 = vmatpush1.msra.mxu0 %v2128
        %2191 = vmatprep.subr.mxu0 0.0
        %2192 = vmatpush1.msra.mxu0 %v2129
        %2193 = vmatprep.subr.mxu0 0.0
        %2194 = vmatpush1.msra.mxu0 %v2130
        %2195 = vmatprep.mubr.f32.mxu0 %v1034
        %2196 = vmatmul.mubr.f32.gmra.mrb[0].mxu0 %v229
        %v2197 = vpop.f32.mrb[0].mxu0
        %v2198 = vadd.f32 0.0, %v2197
        %v2199 = vpop.f32.mrb[0].mxu0
        %2200 = vdwg.mxu0
        %2201 = vst.msk [vmem:[#allocation2 + $0x20] sm:$0xf] %vm1106, %v2198
        %v2202 = vld [vmem:[%s2] sm:$0xf]
        %v2203 = vld [vmem:[#allocation2] sm:$0xff]
        %v2204 = vld [vmem:[#allocation2 + $0x8] sm:$0xff]
        %v2205 = vld [vmem:[#allocation2 + $0x10] sm:$0xff]
        %v2206 = vld [vmem:[#allocation2 + $0x18] sm:$0xff]
        %v2207 = vld [vmem:[#allocation2 + $0x20] sm:$0xf]
        %vm2208 = vcmask 293888
        %v2210 = vsel %vm2208, %v2202, 0
        %vm2212 = vcmask 1043456
        %v2214 = vsel %vm2212, %v2207, 0
        %2216 = vmatprep.subr.mxu0 0.0
        %2217 = vmatpush1.msra.mxu0 %v2203
        %2218 = vmatprep.subr.mxu0 0.0
        %2219 = vmatpush1.msra.mxu0 %v2204
        %2220 = vmatprep.subr.mxu0 0.0
        %2221 = vmatpush1.msra.mxu0 %v2205
        %2222 = vmatprep.subr.mxu0 0.0
        %2223 = vmatpush1.msra.mxu0 %v2206
        %2224 = vmatprep.subr.mxu0 0.0
        %2225 = vmatpush1.msra.mxu0 %v2214
        %2226 = vmatprep.subr.mxu0 0.0
        %2227 = vmatpush1.msra.mxu0 0.0
        %2228 = vmatprep.subr.mxu0 0.0
        %2229 = vmatpush1.msra.mxu0 0.0
        %2230 = vmatprep.subr.mxu0 0.0
        %2231 = vmatpush1.msra.mxu0 0.0
        %2232 = vmatprep.subr.mxu0 0.0
        %2233 = vmatpush1.msra.mxu0 0.0
        %2234 = vmatprep.subr.mxu0 0.0
        %2235 = vmatpush1.msra.mxu0 0.0
        %2236 = vmatprep.subr.mxu0 0.0
        %2237 = vmatpush1.msra.mxu0 0.0
        %2238 = vmatprep.subr.mxu0 0.0
        %2239 = vmatpush1.msra.mxu0 0.0
        %2240 = vmatprep.subr.mxu0 0.0
        %2241 = vmatpush1.msra.mxu0 0.0
        %2242 = vmatprep.subr.mxu0 0.0
        %2243 = vmatpush1.msra.mxu0 0.0
        %2244 = vmatprep.subr.mxu0 0.0
        %2245 = vmatpush1.msra.mxu0 0.0
        %2246 = vmatprep.subr.mxu0 0.0
        %2247 = vmatpush1.msra.mxu0 0.0
        %2248 = vmatprep.subr.mxu0 0.0
        %2249 = vmatpush1.msra.mxu0 0.0
        %2250 = vmatprep.subr.mxu0 0.0
        %2251 = vmatpush1.msra.mxu0 0.0
        %2252 = vmatprep.subr.mxu0 0.0
        %2253 = vmatpush1.msra.mxu0 0.0
        %2254 = vmatprep.subr.mxu0 0.0
        %2255 = vmatpush1.msra.mxu0 0.0
        %2256 = vmatprep.subr.mxu0 0.0
        %2257 = vmatpush1.msra.mxu0 0.0
        %2258 = vmatprep.subr.mxu0 0.0
        %2259 = vmatpush1.msra.mxu0 0.0
        %2260 = vmatprep.subr.mxu0 0.0
        %2261 = vmatpush1.msra.mxu0 0.0
        %2262 = vmatprep.subr.mxu0 0.0
        %2263 = vmatpush1.msra.mxu0 0.0
        %2264 = vmatprep.subr.mxu0 0.0
        %2265 = vmatpush1.msra.mxu0 0.0
        %2266 = vmatprep.subr.mxu0 0.0
        %2267 = vmatpush1.msra.mxu0 0.0
        %2268 = vmatprep.subr.mxu0 0.0
        %2269 = vmatpush1.msra.mxu0 0.0
        %2270 = vmatprep.subr.mxu0 0.0
        %2271 = vmatpush1.msra.mxu0 0.0
        %2272 = vmatprep.subr.mxu0 0.0
        %2273 = vmatpush1.msra.mxu0 0.0
        %2274 = vmatprep.subr.mxu0 0.0
        %2275 = vmatpush1.msra.mxu0 0.0
        %2276 = vmatprep.subr.mxu0 0.0
        %2277 = vmatpush1.msra.mxu0 0.0
        %2278 = vmatprep.subr.mxu0 0.0
        %2279 = vmatpush1.msra.mxu0 0.0
        %2280 = vmatprep.mubr.f32.mxu0 0.0
        %2281 = vmatmul.mubr.f32.gmra.mrb[0].mxu0 %v2210
        %v2282 = vpop.f32.mrb[0].mxu0
        %v2283 = vadd.f32 0.0, %v2282
        %v2284 = vpop.f32.mrb[0].mxu0
        %2285 = vdwg.mxu0
        %2286 = vst.msk [vmem:[%s221] sm:$0xf] %vm1106, %v2283
        %s2287 = sand.u32 %s117, 1
        %s2288 = scalar_lea.sflag [#allocation5], %s2287
        %s2289 = sand.u32 %s117, 1
        %s2290 = smul.addr %s2289, 4
        %s2291 = scalar_lea.vmem [#allocation6], %s2290
        // Predicated region
        $region37: #{tpu_custom_call.1} parent=31 // pred_check
          %p2292 = pneg %p127
        $region38: #{tpu_custom_call.1} parent=31 // pred_check_branch
          %2294 = sbr.rel (%p2292) target = $region40
        $region39: #{tpu_custom_call.1} parent=31 // pred_region
          %s2296 = ssub.s32 64, 64
          %2297 = vsyncadd %s2288, %s2296
          %s2298 = sadd.s32 %s25, %s24
          %s2299 = smul.addr %s2298, 64
          %s2300 = scalar_lea.hbm %s3, %s2299
          %s2302 = sshll.u32 %s2291, 4
          %s2303 = int_to_ptr.vmem [resolvable:$true] %s2302
          %2305 = dma.vmem_to_hbm [thread:$0]  %s2303, 64, %s2300, %s2288
        $region40: #{tpu_custom_call.1} parent=31 // pred_fallthru
          _
      $region32: #{tpu_custom_call.1} parent=5 // pred_fallthru
        _
      %p2306 = scmp.le.s32.totalorder 2, %s15
      // Predicated region
      $region41: #{tpu_custom_call.1} parent=5 // pred_check
        %p2307 = pneg %p2306
      $region42: #{tpu_custom_call.1} parent=5 // pred_check_branch
        %2309 = sbr.rel (%p2307) target = $region44
      $region43: #{tpu_custom_call.1} parent=5 // pred_region
        %s2310 = ssub.s32 %s15, 2
        // Predicated region
        $region45: #{tpu_custom_call.1} parent=43 // pred_check
          %p2311 = pneg %p133
        $region46: #{tpu_custom_call.1} parent=43 // pred_check_branch
          %2313 = sbr.rel (%p2311) target = $region48
        $region47: #{tpu_custom_call.1} parent=43 // pred_region
          %s2314 = sand.u32 %s118, 1
          %s2315 = scalar_lea.sflag [#allocation5], %s2314
          %s2316 = sand.u32 %s118, 1
          %s2317 = smul.addr %s2316, 4
          %s2318 = scalar_lea.vmem [#allocation6], %s2317
          %2319 = dma.done %s2315, 64
        $region48: #{tpu_custom_call.1} parent=43 // pred_fallthru
          _
      $region44: #{tpu_custom_call.1} parent=5 // pred_fallthru
        _
    $region6: #{tpu_custom_call.1} parent=1 // loop_footer
      %s19 = sadd.s32 1, %s15
    $region7: #{tpu_custom_call.1} parent=1 // loop_footer_branch
      %14 = sbr.rel target = $region3
    $region8: #{tpu_custom_call.1} parent=1 // loop_exit
      _
    %2320 = vsyncpa [#allocation4], 1
    %s2321 = scalar_lea.sflag [#allocation4], 1
    %2322 = vsyncpa %s2321, 1
    %2323 = vsyncpa [#allocation5], 1
    %s2324 = scalar_lea.sflag [#allocation5], 1
    %2325 = vsyncpa %s2324, 1

</llo_original>
